<compile_context>
chip_gen: v5e
topology: v5e:2x2
jax: 0.10.0
libtpu: 0.0.40
codegen_flags: <defaults>
</compile_context>

<pallas_src>
import math

import jax
import jax.numpy as jnp
from jax import lax
from jax.experimental import pallas as pl
from jax.experimental.pallas import tpu as pltpu


# MXU operand precision. bf16 is native on v6e/v7x MXUs and safe on v5e because all
# elementwise gate math stays f32. Set to jnp.float32 for strict full-precision parity.
MM_DTYPE = jnp.bfloat16


def _lstm_classifier_kernel(seq_ref, emb_ref, wih_ref, whh_ref, b_ref, wo_ref,
                            bo_ref, out_ref):
    """Fused embedding gather + stacked LSTM + Linear(h_n) + LogSoftmax(dim=1).

    seq_ref : [T*B, 1]  int32, time-major flattened token ids
    emb_ref : [Vp, E]   padded embedding table (bf16, MXU operand dtype)
    wih_ref : [L, E, 4H] input->gate weights, g-columns pre-scaled by 2 (bf16)
    whh_ref : [L, H, 4H] hidden->gate weights, g-columns pre-scaled by 2 (bf16)
    b_ref   : [L, 1, 4H] combined gate bias (b_ih + b_hh), g-cols pre-scaled (f32)
    wo_ref  : [H, O]    output linear weight (transposed), f32
    bo_ref  : [1, O]    output linear bias, f32
    out_ref : [L, B, O] log-softmax(dim=1) of Linear(h_n), f32
    """
    TB = seq_ref.shape[0]
    Vp, _E = emb_ref.shape
    L, _, H4 = wih_ref.shape
    H = H4 // 4
    B = out_ref.shape[1]
    T = TB // B
    mm = whh_ref.dtype

    # --- Embedding gather fused as a one-hot MXU matmul (exact bf16 table rows).
    seq = seq_ref[...]                                                    # [T*B, 1] int32
    onehot = (seq == lax.broadcasted_iota(jnp.int32, (TB, Vp), 1)).astype(mm)
    x_all = jnp.dot(onehot, emb_ref[...],
                    preferred_element_type=jnp.float32).astype(mm)        # [T*B, E] time-major

    # Output-head operands loaded once (hoisted out of the layer loop).
    wo = wo_ref[...]
    bo = bo_ref[...]

    h_finals = []
    for layer in range(L):                       # static: L in {1, 2, 3}
        wih = wih_ref[layer]                     # [in, 4H]
        whh = whh_ref[layer]                     # [H, 4H]
        b = b_ref[layer]                         # [1, 4H]

        # --- Hoisted & batched input projection: ONE matmul for all T timesteps,
        # bias broadcast once.  Entirely off the h/c critical chain.
        xg_all = jnp.dot(x_all, wih, preferred_element_type=jnp.float32) + b   # [T*B, 4H] f32

        # --- Serial recurrence: only h@W_hh + gate math on the dependency chain.
        h = jnp.zeros((B, H), jnp.float32)
        c = jnp.zeros((B, H), jnp.float32)
        hs = []
        for t in range(T):                       # fully unrolled (T static & small)
            gates = xg_all[t * B:(t + 1) * B, :] + jnp.dot(
                h.astype(mm), whh, preferred_element_type=jnp.float32)
            # One full-width sigmoid over [B, 4H]; g-gate columns were pre-scaled by 2,
            # so tanh(z) == 2*sigmoid(2z) - 1.
            s = jax.nn.sigmoid(gates)
            i_g = s[:, 0:H]
            f_g = s[:, H:2 * H]
            g_g = 2.0 * s[:, 2 * H:3 * H] - 1.0
            o_g = s[:, 3 * H:4 * H]
            c = f_g * c + i_g * g_g
            h = o_g * jnp.tanh(c)
            hs.append(h)
        h_finals.append(h)

        if layer + 1 < L:
            # Next layer's time-major input sequence, register-resident (trace-time concat).
            x_all = jnp.concatenate([h_t.astype(mm) for h_t in hs], axis=0)   # [T*B, H]

    # --- Output head hoisted out of the layer loop: ONE [L*B,H] x [H,O] matmul + bias.
    h_n = jnp.concatenate(h_finals, axis=0)                                   # [L*B, H]
    logits_all = jnp.dot(h_n, wo, preferred_element_type=jnp.float32) + bo    # [L*B, O]

    # LogSoftmax over dim=1 of [L, B, O] == over the batch axis of each layer slab
    # (separable per layer; exactly matches the PyTorch module's nn.LogSoftmax(dim=1)).
    for layer in range(L):
        logits = logits_all[layer * B:(layer + 1) * B, :]                     # [B, O]
        m = jnp.max(logits, axis=0, keepdims=True)
        lse = m + jnp.log(jnp.sum(jnp.exp(logits - m), axis=0, keepdims=True))
        out_ref[layer] = logits - lse


def prepare_params(params, mm_dtype=MM_DTYPE):
    """One-time weight prep, hoisted out of the per-call path.

    Folds tanh(z) == 2*sigmoid(2z) - 1 into the weights by scaling the g-gate (cell
    candidate) columns by 2 (exact in FP), casts MXU operands to mm_dtype, and pads the
    embedding table to a lane-aligned vocab for the in-kernel one-hot gather.
    """
    emb, w_ih, w_hh, b, w_o, b_o = (params["emb"], params["w_ih"], params["w_hh"],
                                    params["b"], params["w_o"], params["b_o"])
    L, E, H4 = w_ih.shape
    H = H4 // 4
    assert E == H, "stacked weight layout requires embedding_dim == hidden_dim"

    def scale_g(w):
        return jnp.concatenate(
            [w[..., :2 * H], 2.0 * w[..., 2 * H:3 * H], w[..., 3 * H:]], axis=-1)

    V = emb.shape[0]
    Vp = max(128, ((V + 127) // 128) * 128)
    emb_p = jnp.zeros((Vp, E), mm_dtype).at[:V].set(emb.astype(mm_dtype))

    return {
        "emb_p": emb_p,
        "w_ih": scale_g(w_ih).astype(mm_dtype),
        "w_hh": scale_g(w_hh).astype(mm_dtype),
        "b": scale_g(b).astype(jnp.float32),
        "w_o": w_o.astype(jnp.float32),
        "b_o": b_o.astype(jnp.float32),
    }


@jax.jit
def lstm_classifier_forward(sequence, prep):
    """Forward pass: tiny index reshape + one gridless Pallas kernel call."""
    emb_p, w_ih, w_hh, b, w_o, b_o = (prep["emb_p"], prep["w_ih"], prep["w_hh"],
                                      prep["b"], prep["w_o"], prep["b_o"])
    B, T = sequence.shape
    L, _, H4 = w_ih.shape
    O = w_o.shape[1]

    # Time-major flat index column for the in-kernel one-hot gather (64 bytes of int32;
    # the only per-call prep left outside the kernel).
    seq_tm = sequence.T.reshape(T * B, 1).astype(jnp.int32)

    vmem = pltpu.MemorySpace.VMEM
    out = pl.pallas_call(
        _lstm_classifier_kernel,
        out_shape=jax.ShapeDtypeStruct((L, B, O), jnp.float32),
        # Gridless: the whole (tiny) problem lives in VMEM for a single invocation.
        in_specs=[pl.BlockSpec(memory_space=vmem)] * 7,
        out_specs=pl.BlockSpec(memory_space=vmem),
    )(seq_tm, emb_p, w_ih, w_hh, b, w_o, b_o)

    # torch .squeeze(0): only drops the leading dim when num_layers == 1
    if L == 1:
        out = out[0]
    return out


def reference_forward(sequence, params, mm_dtype=jnp.float32):
    """Pure-JAX reference reproducing the PyTorch forward semantics.

    mm_dtype: precision the matmul operands are quantized to (float32 == exact PyTorch
    semantics; bfloat16 matches the kernel's MXU operand precision).
    """
    emb_table, w_ih, w_hh, b, w_o, b_o = (params["emb"], params["w_ih"],
                                          params["w_hh"], params["b"],
                                          params["w_o"], params["b_o"])
    L, _, H4 = w_ih.shape
    H = H4 // 4
    B, T = sequence.shape
    x = emb_table[sequence.T]                       # [T, B, E] time-major

    h_finals = []
    for l in range(L):
        wih = w_ih[l].astype(mm_dtype)
        whh = w_hh[l].astype(mm_dtype)

        def step(carry, x_t, _wih=wih, _whh=whh, _b=b[l]):
            h, c = carry
            gates = (jnp.dot(x_t.astype(mm_dtype), _wih,
                             preferred_element_type=jnp.float32)
                     + jnp.dot(h.astype(mm_dtype), _whh,
                               preferred_element_type=jnp.float32)
                     + _b)
            i_g = jax.nn.sigmoid(gates[:, 0:H])
            f_g = jax.nn.sigmoid(gates[:, H:2 * H])
            g_g = jnp.tanh(gates[:, 2 * H:3 * H])
            o_g = jax.nn.sigmoid(gates[:, 3 * H:4 * H])
            c = f_g * c + i_g * g_g
            h = o_g * jnp.tanh(c)
            return (h, c), h

        (h_fin, _), hs = jax.lax.scan(
            step,
            (jnp.zeros((B, H), jnp.float32), jnp.zeros((B, H), jnp.float32)),
            x)
        x = hs
        h_finals.append(h_fin)

    h_n = jnp.stack(h_finals)                       # [L, B, H]
    logits = h_n @ w_o + b_o                        # [L, B, O]
    out = jax.nn.log_softmax(logits, axis=1)        # dim=1 == batch axis (as in module)
    if L == 1:
        out = out[0]
    return out


def init_params(key, vocab, embedding_dim, hidden_dim, output_dim, num_layers):
    H, E, L, O = hidden_dim, embedding_dim, num_layers, output_dim
    bound = 1.0 / math.sqrt(H)
    ks = jax.random.split(key, 7)
    emb_table = jax.random.normal(ks[0], (vocab, E), jnp.float32)
    w_ih = jax.random.uniform(ks[1], (L, E, 4 * H), jnp.float32, -bound, bound)
    w_hh = jax.random.uniform(ks[2], (L, H, 4 * H), jnp.float32, -bound, bound)
    b_ih = jax.random.uniform(ks[3], (L, 4 * H), jnp.float32, -bound, bound)
    b_hh = jax.random.uniform(ks[4], (L, 4 * H), jnp.float32, -bound, bound)
    b = (b_ih + b_hh).reshape(L, 1, 4 * H)
    w_o = jax.random.uniform(ks[5], (H, O), jnp.float32, -bound, bound)
    b_o = jax.random.uniform(ks[6], (1, O), jnp.float32, -bound, bound)
    return {"emb": emb_table, "w_ih": w_ih, "w_hh": w_hh, "b": b,
            "w_o": w_o, "b_o": b_o}


if __name__ == "__main__":
    # Small shapes consistent with the module's forward:
    #   batch=2, seq_len=8, vocab(input_dim)=50, embedding_dim=hidden_dim=32,
    #   output_dim=8, num_layers=2.
    B, T = 2, 8
    VOCAB, E, H, O, L = 50, 32, 32, 8, 2

    key = jax.random.PRNGKey(0)
    k_seq, k_par = jax.random.split(key)
    params = init_params(k_par, VOCAB, E, H, O, L)
    sequence = jax.random.randint(k_seq, (B, T), 0, VOCAB, dtype=jnp.int32)

    # One-time weight prep (outside the per-call path).
    prep = jax.tree_util.tree_map(jax.block_until_ready, prepare_params(params))

    out = jax.block_until_ready(lstm_classifier_forward(sequence, prep))

    # Matched-precision reference (bf16 MXU operands, f32 accumulation/elementwise).
    ref_mm = jax.block_until_ready(
        reference_forward(sequence, params, mm_dtype=MM_DTYPE))
    # Exact f32 reference (PyTorch semantics); looser tolerance absorbs bf16 operand
    # quantization in the kernel's matmuls.
    ref_f32 = jax.block_until_ready(reference_forward(sequence, params))

    assert out.shape == ref_f32.shape, (out.shape, ref_f32.shape)
    assert jnp.allclose(out, ref_mm, atol=5e-3, rtol=5e-3), \
        float(jnp.max(jnp.abs(out - ref_mm)))
    assert jnp.allclose(out, ref_f32, atol=5e-2, rtol=5e-2), \
        float(jnp.max(jnp.abs(out - ref_f32)))

    print("KERNEL_OK")
</pallas_src>

<mosaic_0001>
module attributes {stable_mosaic.version = 11 : i64} {
  func.func @_lstm_classifier_kernel(%arg0: memref<16x1xi32, #tpu.memory_space<vmem>>, %arg1: memref<128x32xbf16, #tpu.memory_space<vmem>>, %arg2: memref<2x32x128xbf16, #tpu.memory_space<vmem>>, %arg3: memref<2x32x128xbf16, #tpu.memory_space<vmem>>, %arg4: memref<2x1x128xf32, #tpu.memory_space<vmem>>, %arg5: memref<32x8xf32, #tpu.memory_space<vmem>>, %arg6: memref<1x8xf32, #tpu.memory_space<vmem>>, %arg7: memref<2x2x8xf32, #tpu.memory_space<vmem>>) attributes {dimension_semantics = [], scalar_prefetch = 0 : i64, scratch_operands = 0 : i64, tpu.core_type = #tpu.core_type<tc>} {
    %c0 = arith.constant 0 : index
    %c0_0 = arith.constant 0 : index
    %0 = vector.load %arg0[%c0, %c0_0] : memref<16x1xi32, #tpu.memory_space<vmem>>, vector<16x1xi32>
    %1 = tpu.iota {dimensions = array<i32: 1>} : vector<16x128xi32>
    %2 = vector.broadcast %0 : vector<16x1xi32> to vector<16x128xi32>
    %3 = arith.cmpi eq, %2, %1 : vector<16x128xi32>
    %4 = arith.extui %3 : vector<16x128xi1> to vector<16x128xi32>
    %5 = arith.sitofp %4 : vector<16x128xi32> to vector<16x128xf32>
    %6 = arith.truncf %5 : vector<16x128xf32> to vector<16x128xbf16>
    %c0_1 = arith.constant 0 : index
    %c0_2 = arith.constant 0 : index
    %7 = vector.load %arg1[%c0_1, %c0_2] : memref<128x32xbf16, #tpu.memory_space<vmem>>, vector<128x32xbf16>
    %cst = arith.constant dense<0.000000e+00> : vector<16x32xf32>
    %8 = tpu.matmul %6, %7, %cst {dimension_numbers = #tpu.dot_dimension_numbers<[1], [0], [0], [1], [0, 0, 1, 1], [], []>} : vector<16x128xbf16>, vector<128x32xbf16>, vector<16x32xf32> -> vector<16x32xf32>
    %9 = arith.truncf %8 : vector<16x32xf32> to vector<16x32xbf16>
    %c0_3 = arith.constant 0 : index
    %c0_4 = arith.constant 0 : index
    %10 = vector.load %arg5[%c0_3, %c0_4] : memref<32x8xf32, #tpu.memory_space<vmem>>, vector<32x8xf32>
    %c0_5 = arith.constant 0 : index
    %c0_6 = arith.constant 0 : index
    %11 = vector.load %arg6[%c0_5, %c0_6] : memref<1x8xf32, #tpu.memory_space<vmem>>, vector<1x8xf32>
    %c0_7 = arith.constant 0 : index
    %c0_8 = arith.constant 0 : index
    %c0_9 = arith.constant 0 : index
    %12 = vector.load %arg2[%c0_7, %c0_8, %c0_9] : memref<2x32x128xbf16, #tpu.memory_space<vmem>>, vector<1x32x128xbf16>
    %13 = vector.shape_cast %12 : vector<1x32x128xbf16> to vector<32x128xbf16>
    %c0_10 = arith.constant 0 : index
    %c0_11 = arith.constant 0 : index
    %c0_12 = arith.constant 0 : index
    %14 = vector.load %arg3[%c0_10, %c0_11, %c0_12] : memref<2x32x128xbf16, #tpu.memory_space<vmem>>, vector<1x32x128xbf16>
    %15 = vector.shape_cast %14 : vector<1x32x128xbf16> to vector<32x128xbf16>
    %c0_13 = arith.constant 0 : index
    %c0_14 = arith.constant 0 : index
    %c0_15 = arith.constant 0 : index
    %16 = vector.load %arg4[%c0_13, %c0_14, %c0_15] : memref<2x1x128xf32, #tpu.memory_space<vmem>>, vector<1x1x128xf32>
    %17 = vector.shape_cast %16 : vector<1x1x128xf32> to vector<1x128xf32>
    %cst_16 = arith.constant dense<0.000000e+00> : vector<16x128xf32>
    %18 = tpu.matmul %9, %13, %cst_16 {dimension_numbers = #tpu.dot_dimension_numbers<[1], [0], [0], [1], [0, 0, 1, 1], [], []>} : vector<16x32xbf16>, vector<32x128xbf16>, vector<16x128xf32> -> vector<16x128xf32>
    %19 = vector.broadcast %17 : vector<1x128xf32> to vector<16x128xf32>
    %20 = arith.addf %18, %19 : vector<16x128xf32>
    %cst_17 = arith.constant 0.000000e+00 : f32
    %21 = vector.broadcast %cst_17 : f32 to vector<2x32xf32>
    %cst_18 = arith.constant 0.000000e+00 : f32
    %22 = vector.broadcast %cst_18 : f32 to vector<2x32xf32>
    %23 = vector.extract_strided_slice %20 {offsets = [0, 0], sizes = [2, 128], strides = [1, 1]} : vector<16x128xf32> to vector<2x128xf32>
    %24 = arith.truncf %21 : vector<2x32xf32> to vector<2x32xbf16>
    %cst_19 = arith.constant dense<0.000000e+00> : vector<2x128xf32>
    %25 = tpu.matmul %24, %15, %cst_19 {dimension_numbers = #tpu.dot_dimension_numbers<[1], [0], [0], [1], [0, 0, 1, 1], [], []>} : vector<2x32xbf16>, vector<32x128xbf16>, vector<2x128xf32> -> vector<2x128xf32>
    %26 = arith.addf %23, %25 : vector<2x128xf32>
    %27 = arith.negf %26 : vector<2x128xf32>
    %28 = math.exp %27 : vector<2x128xf32>
    %cst_20 = arith.constant 1.000000e+00 : f32
    %29 = vector.broadcast %cst_20 : f32 to vector<2x128xf32>
    %30 = arith.addf %29, %28 : vector<2x128xf32>
    %31 = arith.divf %29, %30 : vector<2x128xf32>
    %32 = vector.extract_strided_slice %31 {offsets = [0, 0], sizes = [2, 32], strides = [1, 1]} : vector<2x128xf32> to vector<2x32xf32>
    %33 = vector.extract_strided_slice %31 {offsets = [0, 32], sizes = [2, 32], strides = [1, 1]} : vector<2x128xf32> to vector<2x32xf32>
    %34 = vector.extract_strided_slice %31 {offsets = [0, 64], sizes = [2, 32], strides = [1, 1]} : vector<2x128xf32> to vector<2x32xf32>
    %cst_21 = arith.constant 2.000000e+00 : f32
    %35 = vector.broadcast %cst_21 : f32 to vector<2x32xf32>
    %36 = arith.mulf %35, %34 : vector<2x32xf32>
    %cst_22 = arith.constant 1.000000e+00 : f32
    %37 = vector.broadcast %cst_22 : f32 to vector<2x32xf32>
    %38 = arith.subf %36, %37 : vector<2x32xf32>
    %39 = vector.extract_strided_slice %31 {offsets = [0, 96], sizes = [2, 32], strides = [1, 1]} : vector<2x128xf32> to vector<2x32xf32>
    %40 = arith.mulf %33, %22 : vector<2x32xf32>
    %41 = arith.mulf %32, %38 : vector<2x32xf32>
    %42 = arith.addf %40, %41 : vector<2x32xf32>
    %43 = math.tanh %42 : vector<2x32xf32>
    %44 = arith.mulf %39, %43 : vector<2x32xf32>
    %45 = vector.extract_strided_slice %20 {offsets = [2, 0], sizes = [2, 128], strides = [1, 1]} : vector<16x128xf32> to vector<2x128xf32>
    %46 = arith.truncf %44 : vector<2x32xf32> to vector<2x32xbf16>
    %cst_23 = arith.constant dense<0.000000e+00> : vector<2x128xf32>
    %47 = tpu.matmul %46, %15, %cst_23 {dimension_numbers = #tpu.dot_dimension_numbers<[1], [0], [0], [1], [0, 0, 1, 1], [], []>} : vector<2x32xbf16>, vector<32x128xbf16>, vector<2x128xf32> -> vector<2x128xf32>
    %48 = arith.addf %45, %47 : vector<2x128xf32>
    %49 = arith.negf %48 : vector<2x128xf32>
    %50 = math.exp %49 : vector<2x128xf32>
    %cst_24 = arith.constant 1.000000e+00 : f32
    %51 = vector.broadcast %cst_24 : f32 to vector<2x128xf32>
    %52 = arith.addf %51, %50 : vector<2x128xf32>
    %53 = arith.divf %51, %52 : vector<2x128xf32>
    %54 = vector.extract_strided_slice %53 {offsets = [0, 0], sizes = [2, 32], strides = [1, 1]} : vector<2x128xf32> to vector<2x32xf32>
    %55 = vector.extract_strided_slice %53 {offsets = [0, 32], sizes = [2, 32], strides = [1, 1]} : vector<2x128xf32> to vector<2x32xf32>
    %56 = vector.extract_strided_slice %53 {offsets = [0, 64], sizes = [2, 32], strides = [1, 1]} : vector<2x128xf32> to vector<2x32xf32>
    %cst_25 = arith.constant 2.000000e+00 : f32
    %57 = vector.broadcast %cst_25 : f32 to vector<2x32xf32>
    %58 = arith.mulf %57, %56 : vector<2x32xf32>
    %cst_26 = arith.constant 1.000000e+00 : f32
    %59 = vector.broadcast %cst_26 : f32 to vector<2x32xf32>
    %60 = arith.subf %58, %59 : vector<2x32xf32>
    %61 = vector.extract_strided_slice %53 {offsets = [0, 96], sizes = [2, 32], strides = [1, 1]} : vector<2x128xf32> to vector<2x32xf32>
    %62 = arith.mulf %55, %42 : vector<2x32xf32>
    %63 = arith.mulf %54, %60 : vector<2x32xf32>
    %64 = arith.addf %62, %63 : vector<2x32xf32>
    %65 = math.tanh %64 : vector<2x32xf32>
    %66 = arith.mulf %61, %65 : vector<2x32xf32>
    %67 = vector.extract_strided_slice %20 {offsets = [4, 0], sizes = [2, 128], strides = [1, 1]} : vector<16x128xf32> to vector<2x128xf32>
    %68 = arith.truncf %66 : vector<2x32xf32> to vector<2x32xbf16>
    %cst_27 = arith.constant dense<0.000000e+00> : vector<2x128xf32>
    %69 = tpu.matmul %68, %15, %cst_27 {dimension_numbers = #tpu.dot_dimension_numbers<[1], [0], [0], [1], [0, 0, 1, 1], [], []>} : vector<2x32xbf16>, vector<32x128xbf16>, vector<2x128xf32> -> vector<2x128xf32>
    %70 = arith.addf %67, %69 : vector<2x128xf32>
    %71 = arith.negf %70 : vector<2x128xf32>
    %72 = math.exp %71 : vector<2x128xf32>
    %cst_28 = arith.constant 1.000000e+00 : f32
    %73 = vector.broadcast %cst_28 : f32 to vector<2x128xf32>
    %74 = arith.addf %73, %72 : vector<2x128xf32>
    %75 = arith.divf %73, %74 : vector<2x128xf32>
    %76 = vector.extract_strided_slice %75 {offsets = [0, 0], sizes = [2, 32], strides = [1, 1]} : vector<2x128xf32> to vector<2x32xf32>
    %77 = vector.extract_strided_slice %75 {offsets = [0, 32], sizes = [2, 32], strides = [1, 1]} : vector<2x128xf32> to vector<2x32xf32>
    %78 = vector.extract_strided_slice %75 {offsets = [0, 64], sizes = [2, 32], strides = [1, 1]} : vector<2x128xf32> to vector<2x32xf32>
    %cst_29 = arith.constant 2.000000e+00 : f32
    %79 = vector.broadcast %cst_29 : f32 to vector<2x32xf32>
    %80 = arith.mulf %79, %78 : vector<2x32xf32>
    %cst_30 = arith.constant 1.000000e+00 : f32
    %81 = vector.broadcast %cst_30 : f32 to vector<2x32xf32>
    %82 = arith.subf %80, %81 : vector<2x32xf32>
    %83 = vector.extract_strided_slice %75 {offsets = [0, 96], sizes = [2, 32], strides = [1, 1]} : vector<2x128xf32> to vector<2x32xf32>
    %84 = arith.mulf %77, %64 : vector<2x32xf32>
    %85 = arith.mulf %76, %82 : vector<2x32xf32>
    %86 = arith.addf %84, %85 : vector<2x32xf32>
    %87 = math.tanh %86 : vector<2x32xf32>
    %88 = arith.mulf %83, %87 : vector<2x32xf32>
    %89 = vector.extract_strided_slice %20 {offsets = [6, 0], sizes = [2, 128], strides = [1, 1]} : vector<16x128xf32> to vector<2x128xf32>
    %90 = arith.truncf %88 : vector<2x32xf32> to vector<2x32xbf16>
    %cst_31 = arith.constant dense<0.000000e+00> : vector<2x128xf32>
    %91 = tpu.matmul %90, %15, %cst_31 {dimension_numbers = #tpu.dot_dimension_numbers<[1], [0], [0], [1], [0, 0, 1, 1], [], []>} : vector<2x32xbf16>, vector<32x128xbf16>, vector<2x128xf32> -> vector<2x128xf32>
    %92 = arith.addf %89, %91 : vector<2x128xf32>
    %93 = arith.negf %92 : vector<2x128xf32>
    %94 = math.exp %93 : vector<2x128xf32>
    %cst_32 = arith.constant 1.000000e+00 : f32
    %95 = vector.broadcast %cst_32 : f32 to vector<2x128xf32>
    %96 = arith.addf %95, %94 : vector<2x128xf32>
    %97 = arith.divf %95, %96 : vector<2x128xf32>
    %98 = vector.extract_strided_slice %97 {offsets = [0, 0], sizes = [2, 32], strides = [1, 1]} : vector<2x128xf32> to vector<2x32xf32>
    %99 = vector.extract_strided_slice %97 {offsets = [0, 32], sizes = [2, 32], strides = [1, 1]} : vector<2x128xf32> to vector<2x32xf32>
    %100 = vector.extract_strided_slice %97 {offsets = [0, 64], sizes = [2, 32], strides = [1, 1]} : vector<2x128xf32> to vector<2x32xf32>
    %cst_33 = arith.constant 2.000000e+00 : f32
    %101 = vector.broadcast %cst_33 : f32 to vector<2x32xf32>
    %102 = arith.mulf %101, %100 : vector<2x32xf32>
    %cst_34 = arith.constant 1.000000e+00 : f32
    %103 = vector.broadcast %cst_34 : f32 to vector<2x32xf32>
    %104 = arith.subf %102, %103 : vector<2x32xf32>
    %105 = vector.extract_strided_slice %97 {offsets = [0, 96], sizes = [2, 32], strides = [1, 1]} : vector<2x128xf32> to vector<2x32xf32>
    %106 = arith.mulf %99, %86 : vector<2x32xf32>
    %107 = arith.mulf %98, %104 : vector<2x32xf32>
    %108 = arith.addf %106, %107 : vector<2x32xf32>
    %109 = math.tanh %108 : vector<2x32xf32>
    %110 = arith.mulf %105, %109 : vector<2x32xf32>
    %111 = vector.extract_strided_slice %20 {offsets = [8, 0], sizes = [2, 128], strides = [1, 1]} : vector<16x128xf32> to vector<2x128xf32>
    %112 = arith.truncf %110 : vector<2x32xf32> to vector<2x32xbf16>
    %cst_35 = arith.constant dense<0.000000e+00> : vector<2x128xf32>
    %113 = tpu.matmul %112, %15, %cst_35 {dimension_numbers = #tpu.dot_dimension_numbers<[1], [0], [0], [1], [0, 0, 1, 1], [], []>} : vector<2x32xbf16>, vector<32x128xbf16>, vector<2x128xf32> -> vector<2x128xf32>
    %114 = arith.addf %111, %113 : vector<2x128xf32>
    %115 = arith.negf %114 : vector<2x128xf32>
    %116 = math.exp %115 : vector<2x128xf32>
    %cst_36 = arith.constant 1.000000e+00 : f32
    %117 = vector.broadcast %cst_36 : f32 to vector<2x128xf32>
    %118 = arith.addf %117, %116 : vector<2x128xf32>
    %119 = arith.divf %117, %118 : vector<2x128xf32>
    %120 = vector.extract_strided_slice %119 {offsets = [0, 0], sizes = [2, 32], strides = [1, 1]} : vector<2x128xf32> to vector<2x32xf32>
    %121 = vector.extract_strided_slice %119 {offsets = [0, 32], sizes = [2, 32], strides = [1, 1]} : vector<2x128xf32> to vector<2x32xf32>
    %122 = vector.extract_strided_slice %119 {offsets = [0, 64], sizes = [2, 32], strides = [1, 1]} : vector<2x128xf32> to vector<2x32xf32>
    %cst_37 = arith.constant 2.000000e+00 : f32
    %123 = vector.broadcast %cst_37 : f32 to vector<2x32xf32>
    %124 = arith.mulf %123, %122 : vector<2x32xf32>
    %cst_38 = arith.constant 1.000000e+00 : f32
    %125 = vector.broadcast %cst_38 : f32 to vector<2x32xf32>
    %126 = arith.subf %124, %125 : vector<2x32xf32>
    %127 = vector.extract_strided_slice %119 {offsets = [0, 96], sizes = [2, 32], strides = [1, 1]} : vector<2x128xf32> to vector<2x32xf32>
    %128 = arith.mulf %121, %108 : vector<2x32xf32>
    %129 = arith.mulf %120, %126 : vector<2x32xf32>
    %130 = arith.addf %128, %129 : vector<2x32xf32>
    %131 = math.tanh %130 : vector<2x32xf32>
    %132 = arith.mulf %127, %131 : vector<2x32xf32>
    %133 = vector.extract_strided_slice %20 {offsets = [10, 0], sizes = [2, 128], strides = [1, 1]} : vector<16x128xf32> to vector<2x128xf32>
    %134 = arith.truncf %132 : vector<2x32xf32> to vector<2x32xbf16>
    %cst_39 = arith.constant dense<0.000000e+00> : vector<2x128xf32>
    %135 = tpu.matmul %134, %15, %cst_39 {dimension_numbers = #tpu.dot_dimension_numbers<[1], [0], [0], [1], [0, 0, 1, 1], [], []>} : vector<2x32xbf16>, vector<32x128xbf16>, vector<2x128xf32> -> vector<2x128xf32>
    %136 = arith.addf %133, %135 : vector<2x128xf32>
    %137 = arith.negf %136 : vector<2x128xf32>
    %138 = math.exp %137 : vector<2x128xf32>
    %cst_40 = arith.constant 1.000000e+00 : f32
    %139 = vector.broadcast %cst_40 : f32 to vector<2x128xf32>
    %140 = arith.addf %139, %138 : vector<2x128xf32>
    %141 = arith.divf %139, %140 : vector<2x128xf32>
    %142 = vector.extract_strided_slice %141 {offsets = [0, 0], sizes = [2, 32], strides = [1, 1]} : vector<2x128xf32> to vector<2x32xf32>
    %143 = vector.extract_strided_slice %141 {offsets = [0, 32], sizes = [2, 32], strides = [1, 1]} : vector<2x128xf32> to vector<2x32xf32>
    %144 = vector.extract_strided_slice %141 {offsets = [0, 64], sizes = [2, 32], strides = [1, 1]} : vector<2x128xf32> to vector<2x32xf32>
    %cst_41 = arith.constant 2.000000e+00 : f32
    %145 = vector.broadcast %cst_41 : f32 to vector<2x32xf32>
    %146 = arith.mulf %145, %144 : vector<2x32xf32>
    %cst_42 = arith.constant 1.000000e+00 : f32
    %147 = vector.broadcast %cst_42 : f32 to vector<2x32xf32>
    %148 = arith.subf %146, %147 : vector<2x32xf32>
    %149 = vector.extract_strided_slice %141 {offsets = [0, 96], sizes = [2, 32], strides = [1, 1]} : vector<2x128xf32> to vector<2x32xf32>
    %150 = arith.mulf %143, %130 : vector<2x32xf32>
    %151 = arith.mulf %142, %148 : vector<2x32xf32>
    %152 = arith.addf %150, %151 : vector<2x32xf32>
    %153 = math.tanh %152 : vector<2x32xf32>
    %154 = arith.mulf %149, %153 : vector<2x32xf32>
    %155 = vector.extract_strided_slice %20 {offsets = [12, 0], sizes = [2, 128], strides = [1, 1]} : vector<16x128xf32> to vector<2x128xf32>
    %156 = arith.truncf %154 : vector<2x32xf32> to vector<2x32xbf16>
    %cst_43 = arith.constant dense<0.000000e+00> : vector<2x128xf32>
    %157 = tpu.matmul %156, %15, %cst_43 {dimension_numbers = #tpu.dot_dimension_numbers<[1], [0], [0], [1], [0, 0, 1, 1], [], []>} : vector<2x32xbf16>, vector<32x128xbf16>, vector<2x128xf32> -> vector<2x128xf32>
    %158 = arith.addf %155, %157 : vector<2x128xf32>
    %159 = arith.negf %158 : vector<2x128xf32>
    %160 = math.exp %159 : vector<2x128xf32>
    %cst_44 = arith.constant 1.000000e+00 : f32
    %161 = vector.broadcast %cst_44 : f32 to vector<2x128xf32>
    %162 = arith.addf %161, %160 : vector<2x128xf32>
    %163 = arith.divf %161, %162 : vector<2x128xf32>
    %164 = vector.extract_strided_slice %163 {offsets = [0, 0], sizes = [2, 32], strides = [1, 1]} : vector<2x128xf32> to vector<2x32xf32>
    %165 = vector.extract_strided_slice %163 {offsets = [0, 32], sizes = [2, 32], strides = [1, 1]} : vector<2x128xf32> to vector<2x32xf32>
    %166 = vector.extract_strided_slice %163 {offsets = [0, 64], sizes = [2, 32], strides = [1, 1]} : vector<2x128xf32> to vector<2x32xf32>
    %cst_45 = arith.constant 2.000000e+00 : f32
    %167 = vector.broadcast %cst_45 : f32 to vector<2x32xf32>
    %168 = arith.mulf %167, %166 : vector<2x32xf32>
    %cst_46 = arith.constant 1.000000e+00 : f32
    %169 = vector.broadcast %cst_46 : f32 to vector<2x32xf32>
    %170 = arith.subf %168, %169 : vector<2x32xf32>
    %171 = vector.extract_strided_slice %163 {offsets = [0, 96], sizes = [2, 32], strides = [1, 1]} : vector<2x128xf32> to vector<2x32xf32>
    %172 = arith.mulf %165, %152 : vector<2x32xf32>
    %173 = arith.mulf %164, %170 : vector<2x32xf32>
    %174 = arith.addf %172, %173 : vector<2x32xf32>
    %175 = math.tanh %174 : vector<2x32xf32>
    %176 = arith.mulf %171, %175 : vector<2x32xf32>
    %177 = vector.extract_strided_slice %20 {offsets = [14, 0], sizes = [2, 128], strides = [1, 1]} : vector<16x128xf32> to vector<2x128xf32>
    %178 = arith.truncf %176 : vector<2x32xf32> to vector<2x32xbf16>
    %cst_47 = arith.constant dense<0.000000e+00> : vector<2x128xf32>
    %179 = tpu.matmul %178, %15, %cst_47 {dimension_numbers = #tpu.dot_dimension_numbers<[1], [0], [0], [1], [0, 0, 1, 1], [], []>} : vector<2x32xbf16>, vector<32x128xbf16>, vector<2x128xf32> -> vector<2x128xf32>
    %180 = arith.addf %177, %179 : vector<2x128xf32>
    %181 = arith.negf %180 : vector<2x128xf32>
    %182 = math.exp %181 : vector<2x128xf32>
    %cst_48 = arith.constant 1.000000e+00 : f32
    %183 = vector.broadcast %cst_48 : f32 to vector<2x128xf32>
    %184 = arith.addf %183, %182 : vector<2x128xf32>
    %185 = arith.divf %183, %184 : vector<2x128xf32>
    %186 = vector.extract_strided_slice %185 {offsets = [0, 0], sizes = [2, 32], strides = [1, 1]} : vector<2x128xf32> to vector<2x32xf32>
    %187 = vector.extract_strided_slice %185 {offsets = [0, 32], sizes = [2, 32], strides = [1, 1]} : vector<2x128xf32> to vector<2x32xf32>
    %188 = vector.extract_strided_slice %185 {offsets = [0, 64], sizes = [2, 32], strides = [1, 1]} : vector<2x128xf32> to vector<2x32xf32>
    %cst_49 = arith.constant 2.000000e+00 : f32
    %189 = vector.broadcast %cst_49 : f32 to vector<2x32xf32>
    %190 = arith.mulf %189, %188 : vector<2x32xf32>
    %cst_50 = arith.constant 1.000000e+00 : f32
    %191 = vector.broadcast %cst_50 : f32 to vector<2x32xf32>
    %192 = arith.subf %190, %191 : vector<2x32xf32>
    %193 = vector.extract_strided_slice %185 {offsets = [0, 96], sizes = [2, 32], strides = [1, 1]} : vector<2x128xf32> to vector<2x32xf32>
    %194 = arith.mulf %187, %174 : vector<2x32xf32>
    %195 = arith.mulf %186, %192 : vector<2x32xf32>
    %196 = arith.addf %194, %195 : vector<2x32xf32>
    %197 = math.tanh %196 : vector<2x32xf32>
    %198 = arith.mulf %193, %197 : vector<2x32xf32>
    %199 = arith.truncf %44 : vector<2x32xf32> to vector<2x32xbf16>
    %200 = arith.truncf %66 : vector<2x32xf32> to vector<2x32xbf16>
    %201 = arith.truncf %88 : vector<2x32xf32> to vector<2x32xbf16>
    %202 = arith.truncf %110 : vector<2x32xf32> to vector<2x32xbf16>
    %203 = arith.truncf %132 : vector<2x32xf32> to vector<2x32xbf16>
    %204 = arith.truncf %154 : vector<2x32xf32> to vector<2x32xbf16>
    %205 = arith.truncf %176 : vector<2x32xf32> to vector<2x32xbf16>
    %206 = arith.truncf %198 : vector<2x32xf32> to vector<2x32xbf16>
    %207 = tpu.concatenate %199, %200, %201, %202, %203, %204, %205, %206 in 0 : vector<2x32xbf16>, vector<2x32xbf16>, vector<2x32xbf16>, vector<2x32xbf16>, vector<2x32xbf16>, vector<2x32xbf16>, vector<2x32xbf16>, vector<2x32xbf16> -> vector<16x32xbf16>
    %c1 = arith.constant 1 : index
    %c0_51 = arith.constant 0 : index
    %c0_52 = arith.constant 0 : index
    %208 = vector.load %arg2[%c1, %c0_51, %c0_52] : memref<2x32x128xbf16, #tpu.memory_space<vmem>>, vector<1x32x128xbf16>
    %209 = vector.shape_cast %208 : vector<1x32x128xbf16> to vector<32x128xbf16>
    %c1_53 = arith.constant 1 : index
    %c0_54 = arith.constant 0 : index
    %c0_55 = arith.constant 0 : index
    %210 = vector.load %arg3[%c1_53, %c0_54, %c0_55] : memref<2x32x128xbf16, #tpu.memory_space<vmem>>, vector<1x32x128xbf16>
    %211 = vector.shape_cast %210 : vector<1x32x128xbf16> to vector<32x128xbf16>
    %c1_56 = arith.constant 1 : index
    %c0_57 = arith.constant 0 : index
    %c0_58 = arith.constant 0 : index
    %212 = vector.load %arg4[%c1_56, %c0_57, %c0_58] : memref<2x1x128xf32, #tpu.memory_space<vmem>>, vector<1x1x128xf32>
    %213 = vector.shape_cast %212 : vector<1x1x128xf32> to vector<1x128xf32>
    %cst_59 = arith.constant dense<0.000000e+00> : vector<16x128xf32>
    %214 = tpu.matmul %207, %209, %cst_59 {dimension_numbers = #tpu.dot_dimension_numbers<[1], [0], [0], [1], [0, 0, 1, 1], [], []>} : vector<16x32xbf16>, vector<32x128xbf16>, vector<16x128xf32> -> vector<16x128xf32>
    %215 = vector.broadcast %213 : vector<1x128xf32> to vector<16x128xf32>
    %216 = arith.addf %214, %215 : vector<16x128xf32>
    %cst_60 = arith.constant 0.000000e+00 : f32
    %217 = vector.broadcast %cst_60 : f32 to vector<2x32xf32>
    %cst_61 = arith.constant 0.000000e+00 : f32
    %218 = vector.broadcast %cst_61 : f32 to vector<2x32xf32>
    %219 = vector.extract_strided_slice %216 {offsets = [0, 0], sizes = [2, 128], strides = [1, 1]} : vector<16x128xf32> to vector<2x128xf32>
    %220 = arith.truncf %217 : vector<2x32xf32> to vector<2x32xbf16>
    %cst_62 = arith.constant dense<0.000000e+00> : vector<2x128xf32>
    %221 = tpu.matmul %220, %211, %cst_62 {dimension_numbers = #tpu.dot_dimension_numbers<[1], [0], [0], [1], [0, 0, 1, 1], [], []>} : vector<2x32xbf16>, vector<32x128xbf16>, vector<2x128xf32> -> vector<2x128xf32>
    %222 = arith.addf %219, %221 : vector<2x128xf32>
    %223 = arith.negf %222 : vector<2x128xf32>
    %224 = math.exp %223 : vector<2x128xf32>
    %cst_63 = arith.constant 1.000000e+00 : f32
    %225 = vector.broadcast %cst_63 : f32 to vector<2x128xf32>
    %226 = arith.addf %225, %224 : vector<2x128xf32>
    %227 = arith.divf %225, %226 : vector<2x128xf32>
    %228 = vector.extract_strided_slice %227 {offsets = [0, 0], sizes = [2, 32], strides = [1, 1]} : vector<2x128xf32> to vector<2x32xf32>
    %229 = vector.extract_strided_slice %227 {offsets = [0, 32], sizes = [2, 32], strides = [1, 1]} : vector<2x128xf32> to vector<2x32xf32>
    %230 = vector.extract_strided_slice %227 {offsets = [0, 64], sizes = [2, 32], strides = [1, 1]} : vector<2x128xf32> to vector<2x32xf32>
    %cst_64 = arith.constant 2.000000e+00 : f32
    %231 = vector.broadcast %cst_64 : f32 to vector<2x32xf32>
    %232 = arith.mulf %231, %230 : vector<2x32xf32>
    %cst_65 = arith.constant 1.000000e+00 : f32
    %233 = vector.broadcast %cst_65 : f32 to vector<2x32xf32>
    %234 = arith.subf %232, %233 : vector<2x32xf32>
    %235 = vector.extract_strided_slice %227 {offsets = [0, 96], sizes = [2, 32], strides = [1, 1]} : vector<2x128xf32> to vector<2x32xf32>
    %236 = arith.mulf %229, %218 : vector<2x32xf32>
    %237 = arith.mulf %228, %234 : vector<2x32xf32>
    %238 = arith.addf %236, %237 : vector<2x32xf32>
    %239 = math.tanh %238 : vector<2x32xf32>
    %240 = arith.mulf %235, %239 : vector<2x32xf32>
    %241 = vector.extract_strided_slice %216 {offsets = [2, 0], sizes = [2, 128], strides = [1, 1]} : vector<16x128xf32> to vector<2x128xf32>
    %242 = arith.truncf %240 : vector<2x32xf32> to vector<2x32xbf16>
    %cst_66 = arith.constant dense<0.000000e+00> : vector<2x128xf32>
    %243 = tpu.matmul %242, %211, %cst_66 {dimension_numbers = #tpu.dot_dimension_numbers<[1], [0], [0], [1], [0, 0, 1, 1], [], []>} : vector<2x32xbf16>, vector<32x128xbf16>, vector<2x128xf32> -> vector<2x128xf32>
    %244 = arith.addf %241, %243 : vector<2x128xf32>
    %245 = arith.negf %244 : vector<2x128xf32>
    %246 = math.exp %245 : vector<2x128xf32>
    %cst_67 = arith.constant 1.000000e+00 : f32
    %247 = vector.broadcast %cst_67 : f32 to vector<2x128xf32>
    %248 = arith.addf %247, %246 : vector<2x128xf32>
    %249 = arith.divf %247, %248 : vector<2x128xf32>
    %250 = vector.extract_strided_slice %249 {offsets = [0, 0], sizes = [2, 32], strides = [1, 1]} : vector<2x128xf32> to vector<2x32xf32>
    %251 = vector.extract_strided_slice %249 {offsets = [0, 32], sizes = [2, 32], strides = [1, 1]} : vector<2x128xf32> to vector<2x32xf32>
    %252 = vector.extract_strided_slice %249 {offsets = [0, 64], sizes = [2, 32], strides = [1, 1]} : vector<2x128xf32> to vector<2x32xf32>
    %cst_68 = arith.constant 2.000000e+00 : f32
    %253 = vector.broadcast %cst_68 : f32 to vector<2x32xf32>
    %254 = arith.mulf %253, %252 : vector<2x32xf32>
    %cst_69 = arith.constant 1.000000e+00 : f32
    %255 = vector.broadcast %cst_69 : f32 to vector<2x32xf32>
    %256 = arith.subf %254, %255 : vector<2x32xf32>
    %257 = vector.extract_strided_slice %249 {offsets = [0, 96], sizes = [2, 32], strides = [1, 1]} : vector<2x128xf32> to vector<2x32xf32>
    %258 = arith.mulf %251, %238 : vector<2x32xf32>
    %259 = arith.mulf %250, %256 : vector<2x32xf32>
    %260 = arith.addf %258, %259 : vector<2x32xf32>
    %261 = math.tanh %260 : vector<2x32xf32>
    %262 = arith.mulf %257, %261 : vector<2x32xf32>
    %263 = vector.extract_strided_slice %216 {offsets = [4, 0], sizes = [2, 128], strides = [1, 1]} : vector<16x128xf32> to vector<2x128xf32>
    %264 = arith.truncf %262 : vector<2x32xf32> to vector<2x32xbf16>
    %cst_70 = arith.constant dense<0.000000e+00> : vector<2x128xf32>
    %265 = tpu.matmul %264, %211, %cst_70 {dimension_numbers = #tpu.dot_dimension_numbers<[1], [0], [0], [1], [0, 0, 1, 1], [], []>} : vector<2x32xbf16>, vector<32x128xbf16>, vector<2x128xf32> -> vector<2x128xf32>
    %266 = arith.addf %263, %265 : vector<2x128xf32>
    %267 = arith.negf %266 : vector<2x128xf32>
    %268 = math.exp %267 : vector<2x128xf32>
    %cst_71 = arith.constant 1.000000e+00 : f32
    %269 = vector.broadcast %cst_71 : f32 to vector<2x128xf32>
    %270 = arith.addf %269, %268 : vector<2x128xf32>
    %271 = arith.divf %269, %270 : vector<2x128xf32>
    %272 = vector.extract_strided_slice %271 {offsets = [0, 0], sizes = [2, 32], strides = [1, 1]} : vector<2x128xf32> to vector<2x32xf32>
    %273 = vector.extract_strided_slice %271 {offsets = [0, 32], sizes = [2, 32], strides = [1, 1]} : vector<2x128xf32> to vector<2x32xf32>
    %274 = vector.extract_strided_slice %271 {offsets = [0, 64], sizes = [2, 32], strides = [1, 1]} : vector<2x128xf32> to vector<2x32xf32>
    %cst_72 = arith.constant 2.000000e+00 : f32
    %275 = vector.broadcast %cst_72 : f32 to vector<2x32xf32>
    %276 = arith.mulf %275, %274 : vector<2x32xf32>
    %cst_73 = arith.constant 1.000000e+00 : f32
    %277 = vector.broadcast %cst_73 : f32 to vector<2x32xf32>
    %278 = arith.subf %276, %277 : vector<2x32xf32>
    %279 = vector.extract_strided_slice %271 {offsets = [0, 96], sizes = [2, 32], strides = [1, 1]} : vector<2x128xf32> to vector<2x32xf32>
    %280 = arith.mulf %273, %260 : vector<2x32xf32>
    %281 = arith.mulf %272, %278 : vector<2x32xf32>
    %282 = arith.addf %280, %281 : vector<2x32xf32>
    %283 = math.tanh %282 : vector<2x32xf32>
    %284 = arith.mulf %279, %283 : vector<2x32xf32>
    %285 = vector.extract_strided_slice %216 {offsets = [6, 0], sizes = [2, 128], strides = [1, 1]} : vector<16x128xf32> to vector<2x128xf32>
    %286 = arith.truncf %284 : vector<2x32xf32> to vector<2x32xbf16>
    %cst_74 = arith.constant dense<0.000000e+00> : vector<2x128xf32>
    %287 = tpu.matmul %286, %211, %cst_74 {dimension_numbers = #tpu.dot_dimension_numbers<[1], [0], [0], [1], [0, 0, 1, 1], [], []>} : vector<2x32xbf16>, vector<32x128xbf16>, vector<2x128xf32> -> vector<2x128xf32>
    %288 = arith.addf %285, %287 : vector<2x128xf32>
    %289 = arith.negf %288 : vector<2x128xf32>
    %290 = math.exp %289 : vector<2x128xf32>
    %cst_75 = arith.constant 1.000000e+00 : f32
    %291 = vector.broadcast %cst_75 : f32 to vector<2x128xf32>
    %292 = arith.addf %291, %290 : vector<2x128xf32>
    %293 = arith.divf %291, %292 : vector<2x128xf32>
    %294 = vector.extract_strided_slice %293 {offsets = [0, 0], sizes = [2, 32], strides = [1, 1]} : vector<2x128xf32> to vector<2x32xf32>
    %295 = vector.extract_strided_slice %293 {offsets = [0, 32], sizes = [2, 32], strides = [1, 1]} : vector<2x128xf32> to vector<2x32xf32>
    %296 = vector.extract_strided_slice %293 {offsets = [0, 64], sizes = [2, 32], strides = [1, 1]} : vector<2x128xf32> to vector<2x32xf32>
    %cst_76 = arith.constant 2.000000e+00 : f32
    %297 = vector.broadcast %cst_76 : f32 to vector<2x32xf32>
    %298 = arith.mulf %297, %296 : vector<2x32xf32>
    %cst_77 = arith.constant 1.000000e+00 : f32
    %299 = vector.broadcast %cst_77 : f32 to vector<2x32xf32>
    %300 = arith.subf %298, %299 : vector<2x32xf32>
    %301 = vector.extract_strided_slice %293 {offsets = [0, 96], sizes = [2, 32], strides = [1, 1]} : vector<2x128xf32> to vector<2x32xf32>
    %302 = arith.mulf %295, %282 : vector<2x32xf32>
    %303 = arith.mulf %294, %300 : vector<2x32xf32>
    %304 = arith.addf %302, %303 : vector<2x32xf32>
    %305 = math.tanh %304 : vector<2x32xf32>
    %306 = arith.mulf %301, %305 : vector<2x32xf32>
    %307 = vector.extract_strided_slice %216 {offsets = [8, 0], sizes = [2, 128], strides = [1, 1]} : vector<16x128xf32> to vector<2x128xf32>
    %308 = arith.truncf %306 : vector<2x32xf32> to vector<2x32xbf16>
    %cst_78 = arith.constant dense<0.000000e+00> : vector<2x128xf32>
    %309 = tpu.matmul %308, %211, %cst_78 {dimension_numbers = #tpu.dot_dimension_numbers<[1], [0], [0], [1], [0, 0, 1, 1], [], []>} : vector<2x32xbf16>, vector<32x128xbf16>, vector<2x128xf32> -> vector<2x128xf32>
    %310 = arith.addf %307, %309 : vector<2x128xf32>
    %311 = arith.negf %310 : vector<2x128xf32>
    %312 = math.exp %311 : vector<2x128xf32>
    %cst_79 = arith.constant 1.000000e+00 : f32
    %313 = vector.broadcast %cst_79 : f32 to vector<2x128xf32>
    %314 = arith.addf %313, %312 : vector<2x128xf32>
    %315 = arith.divf %313, %314 : vector<2x128xf32>
    %316 = vector.extract_strided_slice %315 {offsets = [0, 0], sizes = [2, 32], strides = [1, 1]} : vector<2x128xf32> to vector<2x32xf32>
    %317 = vector.extract_strided_slice %315 {offsets = [0, 32], sizes = [2, 32], strides = [1, 1]} : vector<2x128xf32> to vector<2x32xf32>
    %318 = vector.extract_strided_slice %315 {offsets = [0, 64], sizes = [2, 32], strides = [1, 1]} : vector<2x128xf32> to vector<2x32xf32>
    %cst_80 = arith.constant 2.000000e+00 : f32
    %319 = vector.broadcast %cst_80 : f32 to vector<2x32xf32>
    %320 = arith.mulf %319, %318 : vector<2x32xf32>
    %cst_81 = arith.constant 1.000000e+00 : f32
    %321 = vector.broadcast %cst_81 : f32 to vector<2x32xf32>
    %322 = arith.subf %320, %321 : vector<2x32xf32>
    %323 = vector.extract_strided_slice %315 {offsets = [0, 96], sizes = [2, 32], strides = [1, 1]} : vector<2x128xf32> to vector<2x32xf32>
    %324 = arith.mulf %317, %304 : vector<2x32xf32>
    %325 = arith.mulf %316, %322 : vector<2x32xf32>
    %326 = arith.addf %324, %325 : vector<2x32xf32>
    %327 = math.tanh %326 : vector<2x32xf32>
    %328 = arith.mulf %323, %327 : vector<2x32xf32>
    %329 = vector.extract_strided_slice %216 {offsets = [10, 0], sizes = [2, 128], strides = [1, 1]} : vector<16x128xf32> to vector<2x128xf32>
    %330 = arith.truncf %328 : vector<2x32xf32> to vector<2x32xbf16>
    %cst_82 = arith.constant dense<0.000000e+00> : vector<2x128xf32>
    %331 = tpu.matmul %330, %211, %cst_82 {dimension_numbers = #tpu.dot_dimension_numbers<[1], [0], [0], [1], [0, 0, 1, 1], [], []>} : vector<2x32xbf16>, vector<32x128xbf16>, vector<2x128xf32> -> vector<2x128xf32>
    %332 = arith.addf %329, %331 : vector<2x128xf32>
    %333 = arith.negf %332 : vector<2x128xf32>
    %334 = math.exp %333 : vector<2x128xf32>
    %cst_83 = arith.constant 1.000000e+00 : f32
    %335 = vector.broadcast %cst_83 : f32 to vector<2x128xf32>
    %336 = arith.addf %335, %334 : vector<2x128xf32>
    %337 = arith.divf %335, %336 : vector<2x128xf32>
    %338 = vector.extract_strided_slice %337 {offsets = [0, 0], sizes = [2, 32], strides = [1, 1]} : vector<2x128xf32> to vector<2x32xf32>
    %339 = vector.extract_strided_slice %337 {offsets = [0, 32], sizes = [2, 32], strides = [1, 1]} : vector<2x128xf32> to vector<2x32xf32>
    %340 = vector.extract_strided_slice %337 {offsets = [0, 64], sizes = [2, 32], strides = [1, 1]} : vector<2x128xf32> to vector<2x32xf32>
    %cst_84 = arith.constant 2.000000e+00 : f32
    %341 = vector.broadcast %cst_84 : f32 to vector<2x32xf32>
    %342 = arith.mulf %341, %340 : vector<2x32xf32>
    %cst_85 = arith.constant 1.000000e+00 : f32
    %343 = vector.broadcast %cst_85 : f32 to vector<2x32xf32>
    %344 = arith.subf %342, %343 : vector<2x32xf32>
    %345 = vector.extract_strided_slice %337 {offsets = [0, 96], sizes = [2, 32], strides = [1, 1]} : vector<2x128xf32> to vector<2x32xf32>
    %346 = arith.mulf %339, %326 : vector<2x32xf32>
    %347 = arith.mulf %338, %344 : vector<2x32xf32>
    %348 = arith.addf %346, %347 : vector<2x32xf32>
    %349 = math.tanh %348 : vector<2x32xf32>
    %350 = arith.mulf %345, %349 : vector<2x32xf32>
    %351 = vector.extract_strided_slice %216 {offsets = [12, 0], sizes = [2, 128], strides = [1, 1]} : vector<16x128xf32> to vector<2x128xf32>
    %352 = arith.truncf %350 : vector<2x32xf32> to vector<2x32xbf16>
    %cst_86 = arith.constant dense<0.000000e+00> : vector<2x128xf32>
    %353 = tpu.matmul %352, %211, %cst_86 {dimension_numbers = #tpu.dot_dimension_numbers<[1], [0], [0], [1], [0, 0, 1, 1], [], []>} : vector<2x32xbf16>, vector<32x128xbf16>, vector<2x128xf32> -> vector<2x128xf32>
    %354 = arith.addf %351, %353 : vector<2x128xf32>
    %355 = arith.negf %354 : vector<2x128xf32>
    %356 = math.exp %355 : vector<2x128xf32>
    %cst_87 = arith.constant 1.000000e+00 : f32
    %357 = vector.broadcast %cst_87 : f32 to vector<2x128xf32>
    %358 = arith.addf %357, %356 : vector<2x128xf32>
    %359 = arith.divf %357, %358 : vector<2x128xf32>
    %360 = vector.extract_strided_slice %359 {offsets = [0, 0], sizes = [2, 32], strides = [1, 1]} : vector<2x128xf32> to vector<2x32xf32>
    %361 = vector.extract_strided_slice %359 {offsets = [0, 32], sizes = [2, 32], strides = [1, 1]} : vector<2x128xf32> to vector<2x32xf32>
    %362 = vector.extract_strided_slice %359 {offsets = [0, 64], sizes = [2, 32], strides = [1, 1]} : vector<2x128xf32> to vector<2x32xf32>
    %cst_88 = arith.constant 2.000000e+00 : f32
    %363 = vector.broadcast %cst_88 : f32 to vector<2x32xf32>
    %364 = arith.mulf %363, %362 : vector<2x32xf32>
    %cst_89 = arith.constant 1.000000e+00 : f32
    %365 = vector.broadcast %cst_89 : f32 to vector<2x32xf32>
    %366 = arith.subf %364, %365 : vector<2x32xf32>
    %367 = vector.extract_strided_slice %359 {offsets = [0, 96], sizes = [2, 32], strides = [1, 1]} : vector<2x128xf32> to vector<2x32xf32>
    %368 = arith.mulf %361, %348 : vector<2x32xf32>
    %369 = arith.mulf %360, %366 : vector<2x32xf32>
    %370 = arith.addf %368, %369 : vector<2x32xf32>
    %371 = math.tanh %370 : vector<2x32xf32>
    %372 = arith.mulf %367, %371 : vector<2x32xf32>
    %373 = vector.extract_strided_slice %216 {offsets = [14, 0], sizes = [2, 128], strides = [1, 1]} : vector<16x128xf32> to vector<2x128xf32>
    %374 = arith.truncf %372 : vector<2x32xf32> to vector<2x32xbf16>
    %cst_90 = arith.constant dense<0.000000e+00> : vector<2x128xf32>
    %375 = tpu.matmul %374, %211, %cst_90 {dimension_numbers = #tpu.dot_dimension_numbers<[1], [0], [0], [1], [0, 0, 1, 1], [], []>} : vector<2x32xbf16>, vector<32x128xbf16>, vector<2x128xf32> -> vector<2x128xf32>
    %376 = arith.addf %373, %375 : vector<2x128xf32>
    %377 = arith.negf %376 : vector<2x128xf32>
    %378 = math.exp %377 : vector<2x128xf32>
    %cst_91 = arith.constant 1.000000e+00 : f32
    %379 = vector.broadcast %cst_91 : f32 to vector<2x128xf32>
    %380 = arith.addf %379, %378 : vector<2x128xf32>
    %381 = arith.divf %379, %380 : vector<2x128xf32>
    %382 = vector.extract_strided_slice %381 {offsets = [0, 0], sizes = [2, 32], strides = [1, 1]} : vector<2x128xf32> to vector<2x32xf32>
    %383 = vector.extract_strided_slice %381 {offsets = [0, 32], sizes = [2, 32], strides = [1, 1]} : vector<2x128xf32> to vector<2x32xf32>
    %384 = vector.extract_strided_slice %381 {offsets = [0, 64], sizes = [2, 32], strides = [1, 1]} : vector<2x128xf32> to vector<2x32xf32>
    %cst_92 = arith.constant 2.000000e+00 : f32
    %385 = vector.broadcast %cst_92 : f32 to vector<2x32xf32>
    %386 = arith.mulf %385, %384 : vector<2x32xf32>
    %cst_93 = arith.constant 1.000000e+00 : f32
    %387 = vector.broadcast %cst_93 : f32 to vector<2x32xf32>
    %388 = arith.subf %386, %387 : vector<2x32xf32>
    %389 = vector.extract_strided_slice %381 {offsets = [0, 96], sizes = [2, 32], strides = [1, 1]} : vector<2x128xf32> to vector<2x32xf32>
    %390 = arith.mulf %383, %370 : vector<2x32xf32>
    %391 = arith.mulf %382, %388 : vector<2x32xf32>
    %392 = arith.addf %390, %391 : vector<2x32xf32>
    %393 = math.tanh %392 : vector<2x32xf32>
    %394 = arith.mulf %389, %393 : vector<2x32xf32>
    %395 = tpu.concatenate %198, %394 in 0 : vector<2x32xf32>, vector<2x32xf32> -> vector<4x32xf32>
    %cst_94 = arith.constant dense<0.000000e+00> : vector<4x8xf32>
    %396 = tpu.matmul %395, %10, %cst_94 {dimension_numbers = #tpu.dot_dimension_numbers<[1], [0], [0], [1], [0, 0, 1, 1], [], []>} : vector<4x32xf32>, vector<32x8xf32>, vector<4x8xf32> -> vector<4x8xf32>
    %397 = vector.broadcast %11 : vector<1x8xf32> to vector<4x8xf32>
    %398 = arith.addf %396, %397 : vector<4x8xf32>
    %399 = vector.extract_strided_slice %398 {offsets = [0, 0], sizes = [2, 8], strides = [1, 1]} : vector<4x8xf32> to vector<2x8xf32>
    %cst_95 = arith.constant dense<0xFF800000> : vector<8xf32>
    %400 = vector.multi_reduction <maximumf>, %399, %cst_95 [0] : vector<2x8xf32> to vector<8xf32>
    %401 = vector.shape_cast %400 : vector<8xf32> to vector<1x8xf32>
    %402 = vector.broadcast %401 : vector<1x8xf32> to vector<2x8xf32>
    %403 = arith.subf %399, %402 : vector<2x8xf32>
    %404 = math.exp %403 : vector<2x8xf32>
    %cst_96 = arith.constant dense<0.000000e+00> : vector<8xf32>
    %405 = vector.multi_reduction <add>, %404, %cst_96 [0] : vector<2x8xf32> to vector<8xf32>
    %406 = vector.shape_cast %405 : vector<8xf32> to vector<1x8xf32>
    %407 = math.log %406 : vector<1x8xf32>
    %408 = arith.addf %401, %407 : vector<1x8xf32>
    %409 = vector.broadcast %408 : vector<1x8xf32> to vector<2x8xf32>
    %410 = arith.subf %399, %409 : vector<2x8xf32>
    %c0_97 = arith.constant 0 : index
    %c0_98 = arith.constant 0 : index
    %c0_99 = arith.constant 0 : index
    %411 = vector.load %arg7[%c0_97, %c0_98, %c0_99] : memref<2x2x8xf32, #tpu.memory_space<vmem>>, vector<1x2x8xf32>
    %412 = vector.shape_cast %411 : vector<1x2x8xf32> to vector<2x8xf32>
    %413 = vector.shape_cast %410 : vector<2x8xf32> to vector<1x2x8xf32>
    tpu.vector_store %arg7[%c0_97, %c0_98, %c0_99], %413 {strides = array<i32>} : memref<2x2x8xf32, #tpu.memory_space<vmem>>, vector<1x2x8xf32>,
    %414 = vector.extract_strided_slice %398 {offsets = [2, 0], sizes = [2, 8], strides = [1, 1]} : vector<4x8xf32> to vector<2x8xf32>
    %cst_100 = arith.constant dense<0xFF800000> : vector<8xf32>
    %415 = vector.multi_reduction <maximumf>, %414, %cst_100 [0] : vector<2x8xf32> to vector<8xf32>
    %416 = vector.shape_cast %415 : vector<8xf32> to vector<1x8xf32>
    %417 = vector.broadcast %416 : vector<1x8xf32> to vector<2x8xf32>
    %418 = arith.subf %414, %417 : vector<2x8xf32>
    %419 = math.exp %418 : vector<2x8xf32>
    %cst_101 = arith.constant dense<0.000000e+00> : vector<8xf32>
    %420 = vector.multi_reduction <add>, %419, %cst_101 [0] : vector<2x8xf32> to vector<8xf32>
    %421 = vector.shape_cast %420 : vector<8xf32> to vector<1x8xf32>
    %422 = math.log %421 : vector<1x8xf32>
    %423 = arith.addf %416, %422 : vector<1x8xf32>
    %424 = vector.broadcast %423 : vector<1x8xf32> to vector<2x8xf32>
    %425 = arith.subf %414, %424 : vector<2x8xf32>
    %c1_102 = arith.constant 1 : index
    %c0_103 = arith.constant 0 : index
    %c0_104 = arith.constant 0 : index
    %426 = vector.load %arg7[%c1_102, %c0_103, %c0_104] : memref<2x2x8xf32, #tpu.memory_space<vmem>>, vector<1x2x8xf32>
    %427 = vector.shape_cast %426 : vector<1x2x8xf32> to vector<2x8xf32>
    %428 = vector.shape_cast %425 : vector<2x8xf32> to vector<1x2x8xf32>
    tpu.vector_store %arg7[%c1_102, %c0_103, %c0_104], %428 {strides = array<i32>} : memref<2x2x8xf32, #tpu.memory_space<vmem>>, vector<1x2x8xf32>,
    return
  }
}

</mosaic_0001>

<llo_original>
// kernel: lstm_classifier_forward.1
$region0: #{lstm_classifier_forward.1}
  #allocation0 [shape = 'u32[]', space=smem, size = 0x4, offset = 0x4, fixed_abs, tag = 'smem constant byte address 0x4 - core index']
  #allocation1 [shape = 'u32[72,128]{1,0:T(1,128)}', space=vmem, size = 0x9000, scoped, tag = 'internal scratch']
  %s0 = inlined_call_operand.vmem [shape: s32[16,1], index: 0, kind: input, shape index: {}]
  %s1 = inlined_call_operand.vmem [shape: bf16[128,32], index: 1, kind: input, shape index: {}]
  %s2 = inlined_call_operand.vmem [shape: bf16[2,32,128], index: 2, kind: input, shape index: {}]
  %s3 = inlined_call_operand.vmem [shape: bf16[2,32,128], index: 3, kind: input, shape index: {}]
  %s4 = inlined_call_operand.vmem [shape: f32[2,1,128], index: 4, kind: input, shape index: {}]
  %s5 = inlined_call_operand.vmem [shape: f32[32,8], index: 5, kind: input, shape index: {}]
  %s6 = inlined_call_operand.vmem [shape: f32[1,8], index: 6, kind: input, shape index: {}]
  %s7 = inlined_call_operand.hbm [shape: f32[2,2,8], index: 7, kind: output, shape index: {}]
  %s8 = sld [smem:[#allocation0]]
  $region38: #{lstm_classifier_forward.1} parent=0
    _
  %s10 = ssub.s32 1, %s8
  %s11 = scalar_select 0, %s10, %s8
  $region1: #{lstm_classifier_forward.1} parent=0
    #allocation2 [shape = 'u8[2048]{0}', space=vmem, size = 0x800, scoped, tag = 'output window, operand 0, single buffered']
    #allocation3 [shape = 's32[1]{0}', space=sflag, size = 0x4, scoped, tag = 'scoped memory for lstm_classifier_forward.1']
    %12 = vsyncpa [#allocation3], 0
    // Predicated region
    $region2: #{lstm_classifier_forward.1} parent=1 // pred_check
      _
    $region3: #{lstm_classifier_forward.1} parent=1 // pred_check_branch
      %14 = sbr.rel (0) target = $region5
    $region4: #{lstm_classifier_forward.1} parent=1 // pred_region
      _
    $region5: #{lstm_classifier_forward.1} parent=1 // pred_fallthru
      _
    // Predicated region
    $region6: #{lstm_classifier_forward.1} parent=1 // pred_check
      _
    $region7: #{lstm_classifier_forward.1} parent=1 // pred_check_branch
      %16 = sbr.rel (0) target = $region9
    $region8: #{lstm_classifier_forward.1} parent=1 // pred_region
      _
    $region9: #{lstm_classifier_forward.1} parent=1 // pred_fallthru
      _
    // Predicated region
    $region10: #{lstm_classifier_forward.1} parent=1 // pred_check
      _
    $region11: #{lstm_classifier_forward.1} parent=1 // pred_check_branch
      %18 = sbr.rel (0) target = $region13
    $region12: #{lstm_classifier_forward.1} parent=1 // pred_region
      _
    $region13: #{lstm_classifier_forward.1} parent=1 // pred_fallthru
      _
    // Predicated region
    $region14: #{lstm_classifier_forward.1} parent=1 // pred_check
      _
    $region15: #{lstm_classifier_forward.1} parent=1 // pred_check_branch
      %20 = sbr.rel (0) target = $region17
    $region16: #{lstm_classifier_forward.1} parent=1 // pred_region
      _
    $region17: #{lstm_classifier_forward.1} parent=1 // pred_fallthru
      _
    // Predicated region
    $region18: #{lstm_classifier_forward.1} parent=1 // pred_check
      _
    $region19: #{lstm_classifier_forward.1} parent=1 // pred_check_branch
      %22 = sbr.rel (0) target = $region21
    $region20: #{lstm_classifier_forward.1} parent=1 // pred_region
      _
    $region21: #{lstm_classifier_forward.1} parent=1 // pred_fallthru
      _
    // Predicated region
    $region22: #{lstm_classifier_forward.1} parent=1 // pred_check
      _
    $region23: #{lstm_classifier_forward.1} parent=1 // pred_check_branch
      %24 = sbr.rel (0) target = $region25
    $region24: #{lstm_classifier_forward.1} parent=1 // pred_region
      _
    $region25: #{lstm_classifier_forward.1} parent=1 // pred_fallthru
      _
    // Predicated region
    $region26: #{lstm_classifier_forward.1} parent=1 // pred_check
      _
    $region27: #{lstm_classifier_forward.1} parent=1 // pred_check_branch
      %26 = sbr.rel (0) target = $region29
    $region28: #{lstm_classifier_forward.1} parent=1 // pred_region
      _
    $region29: #{lstm_classifier_forward.1} parent=1 // pred_fallthru
      _
    %v28 = vld [vmem:[%s0] sm:$0xff]
    %v29 = vld [vmem:[%s0 + $0x8] sm:$0xff]
    %v30 = vlaneseq
    %v31 = vand.u32 %v30, 127
    %32 = vset.pattern.permute.xlu0 0
    %33 = vperm.xlu0 %32, %v28
    %v34 = vpop.permute.xlu0 %33
    %35 = vset.pattern.permute.xlu0 0
    %36 = vperm.xlu0 %35, %v29
    %v37 = vpop.permute.xlu0 %36
    %vm38 = vcmp.eq.s32.totalorder %v34, %v31
    %vm39 = vcmp.eq.s32.totalorder %v37, %v31
    %v40 = vsel %vm38, 1, 0
    %v41 = vsel %vm39, 1, 0
    %v42 = vcvt.s32.f32 %v40
    %v43 = vcvt.s32.f32 %v41
    %v44 = vpack.c.bf16 %v43, %v42
    %v45 = vld [vmem:[%s1] sm:$0xf]
    %v46 = vld [vmem:[%s1 + $0x4] sm:$0xf]
    %v47 = vld [vmem:[%s1 + $0x8] sm:$0xf]
    %v48 = vld [vmem:[%s1 + $0xc] sm:$0xf]
    %v49 = vld [vmem:[%s1 + $0x10] sm:$0xf]
    %v50 = vld [vmem:[%s1 + $0x14] sm:$0xf]
    %v51 = vld [vmem:[%s1 + $0x18] sm:$0xf]
    %v52 = vld [vmem:[%s1 + $0x1c] sm:$0xf]
    %v53 = vld [vmem:[%s1 + $0x20] sm:$0xf]
    %v54 = vld [vmem:[%s1 + $0x24] sm:$0xf]
    %v55 = vld [vmem:[%s1 + $0x28] sm:$0xf]
    %v56 = vld [vmem:[%s1 + $0x2c] sm:$0xf]
    %v57 = vld [vmem:[%s1 + $0x30] sm:$0xf]
    %v58 = vld [vmem:[%s1 + $0x34] sm:$0xf]
    %v59 = vld [vmem:[%s1 + $0x38] sm:$0xf]
    %v60 = vld [vmem:[%s1 + $0x3c] sm:$0xf]
    %v77 = vunpack.c.l.b16 %v45
    %v78 = vunpack.c.l.b16 %v46
    %v79 = vunpack.c.l.b16 %v47
    %v80 = vunpack.c.l.b16 %v48
    %v81 = vunpack.c.l.b16 %v49
    %v82 = vunpack.c.l.b16 %v50
    %v83 = vunpack.c.l.b16 %v51
    %v84 = vunpack.c.l.b16 %v52
    %v85 = vunpack.c.l.b16 %v53
    %v86 = vunpack.c.l.b16 %v54
    %v87 = vunpack.c.l.b16 %v55
    %v88 = vunpack.c.l.b16 %v56
    %v89 = vunpack.c.l.b16 %v57
    %v90 = vunpack.c.l.b16 %v58
    %v91 = vunpack.c.l.b16 %v59
    %v92 = vunpack.c.l.b16 %v60
    %v93 = vpack.c.b16 %v78, %v77
    %v94 = vpack.c.b16 %v80, %v79
    %v95 = vpack.c.b16 %v82, %v81
    %v96 = vpack.c.b16 %v84, %v83
    %v97 = vpack.c.b16 %v86, %v85
    %v98 = vpack.c.b16 %v88, %v87
    %v99 = vpack.c.b16 %v90, %v89
    %v100 = vpack.c.b16 %v92, %v91
    %109 = vmatpush.bf16.msra.mxu0 %v100
    %110 = vmatpush.bf16.msra.mxu0 %v99
    %111 = vmatpush.bf16.msra.mxu0 %v98
    %112 = vmatpush.bf16.msra.mxu0 %v97
    %113 = vmatpush.bf16.msra.mxu0 %v96
    %114 = vmatpush.bf16.msra.mxu0 %v95
    %115 = vmatpush.bf16.msra.mxu0 %v94
    %116 = vmatpush.bf16.msra.mxu0 %v93
    %117 = vmatmul.bf16.gmra.mxu0 %v44
    %v118 = vpop.f32.mrf.mxu0
    %v119 = vadd.f32 0.0, %v118
    %v120 = vpop.f32.mrf.mxu0
    %v121 = vadd.f32 0.0, %v120
    %122 = vdwg.mxu0
    %v123 = vpack.c.bf16 %v121, %v119
    %v124 = vld [vmem:[%s5] sm:$0xff]
    %v125 = vld [vmem:[%s5 + $0x8] sm:$0xff]
    %v126 = vld [vmem:[%s5 + $0x10] sm:$0xff]
    %v127 = vld [vmem:[%s5 + $0x18] sm:$0xff]
    %v128 = vld [vmem:[%s6] sm:$0x1]
    %v129 = vld [vmem:[%s2] sm:$0xf]
    %v130 = vld [vmem:[%s2 + $0x4] sm:$0xf]
    %v131 = vld [vmem:[%s2 + $0x8] sm:$0xf]
    %v132 = vld [vmem:[%s2 + $0xc] sm:$0xf]
    %v133 = vld [vmem:[%s3] sm:$0xf]
    %v134 = vld [vmem:[%s3 + $0x4] sm:$0xf]
    %v135 = vld [vmem:[%s3 + $0x8] sm:$0xf]
    %v136 = vld [vmem:[%s3 + $0xc] sm:$0xf]
    %v137 = vld [vmem:[%s4] sm:$0x1]
    %v139 = vperm.slane %v137, 0
    %v145 = vunpack.c.l.b16 %v129
    %v146 = vunpack.c.l.b16 %v130
    %v147 = vunpack.c.l.b16 %v131
    %v148 = vunpack.c.l.b16 %v132
    %v149 = vpack.c.b16 %v146, %v145
    %v150 = vpack.c.b16 %v148, %v147
    %vm153 = vcmask 261120
    %v155 = vsel %vm153, %v123, 0
    %157 = vmatpush.bf16.msra.mxu0 0
    %158 = vmatpush.bf16.msra.mxu0 0
    %159 = vmatpush.bf16.msra.mxu0 0
    %160 = vmatpush.bf16.msra.mxu0 0
    %161 = vmatpush.bf16.msra.mxu0 0
    %162 = vmatpush.bf16.msra.mxu0 0
    %163 = vmatpush.bf16.msra.mxu0 %v150
    %164 = vmatpush.bf16.msra.mxu0 %v149
    %165 = vmatmul.bf16.gmra.mxu0 %v155
    %v166 = vpop.f32.mrf.mxu0
    %v167 = vadd.f32 %v139, %v166
    %v168 = vpop.f32.mrf.mxu0
    %v169 = vadd.f32 %v139, %v168
    %170 = vdwg.mxu0
    %v175 = vunpack.c.l.b16 %v133
    %v176 = vunpack.c.l.b16 %v134
    %v177 = vunpack.c.l.b16 %v135
    %v178 = vunpack.c.l.b16 %v136
    %v179 = vpack.c.b16 %v176, %v175
    %v180 = vpack.c.b16 %v178, %v177
    %v184 = vsel %vm153, 0, 0
    %186 = vmatpush.bf16.msra.mxu0 0
    %187 = vmatpush.bf16.msra.mxu0 0
    %188 = vmatpush.bf16.msra.mxu0 0
    %189 = vmatpush.bf16.msra.mxu0 0
    %190 = vmatpush.bf16.msra.mxu0 0
    %191 = vmatpush.bf16.msra.mxu0 0
    %192 = vmatpush.bf16.msra.mxu0 %v180
    %193 = vmatpush.bf16.msra.mxu0 %v179
    %194 = vmatmul.bf16.gmra.mxu0 %v184
    %v195 = vpop.f32.mrf.mxu0
    %v196 = vadd.f32 0.0, %v195
    %v197 = vpop.f32.mrf.mxu0
    %198 = vdwg.mxu0
    %v199 = vadd.f32 %v167, %v196
    %v200 = vxor.u32 %v199, 2147483648
    %v201 = vmul.f32 %v200, 1.442695
    %v202 = vpow.pop %v201
    %v203 = vadd.f32 %v202, 1.0
    %v204 = vrcp.pop %v203
    %v205 = vmul.f32 %v203, %v204
    %v206 = vsub.f32 1.0, %v205
    %v207 = vmul.f32 %v204, %v206
    %v208 = vadd.f32 %v204, %v207
    %vm209 = vweird.f32 %v203
    %vm210 = vweird.f32 %v204
    %vm211 = vmor %vm209, %vm210
    %v212 = vsel %vm211, %v204, %v208
    %v213 = vand.u32 2147483647, %v203
    %vm214 = vcmp.eq.f32.partialorder %v213, 8.507059e+37
    %v215 = vand.u32 %v203, 2147483648
    %v216 = vor.u32 1.1754944e-38, %v215
    %v217 = vsel %vm214, %v216, %v212
    %v218 = vmul.f32 1.0, %v217
    %v219 = vmul.f32 %v218, 2.0
    %v220 = vsub.f32 %v219, 1.0
    %v221 = vmul.f32 %v218, 0.0
    %223 = vrot.lane.b32.xlu0 %v220, 64
    %v224 = vpop.permute.xlu0 %223
    %v226 = vmul.f32 %v218, %v224
    %228 = vrot.lane.b32.xlu0 %v226, 32
    %v229 = vpop.permute.xlu0 %228
    %v231 = vadd.f32 %v221, %v229
    %v232 = vtanh.pop %v231
    %234 = vrot.lane.b32.xlu0 %v232, 64
    %v235 = vpop.permute.xlu0 %234
    %v237 = vmul.f32 %v218, %v235
    %v238 = vpack.c.bf16 %v237, %v237
    %v240 = vunpack.c.l.b16 %v238
    %v241 = vpack.c.b16 %v240, %v240
    %242 = vrot.lane.b32.xlu0 %v241, 32
    %v243 = vpop.permute.xlu0 %242
    %v245 = vsel %vm153, %v243, 0
    %247 = vmatpush.bf16.msra.mxu0 0
    %248 = vmatpush.bf16.msra.mxu0 0
    %249 = vmatpush.bf16.msra.mxu0 0
    %250 = vmatpush.bf16.msra.mxu0 0
    %251 = vmatpush.bf16.msra.mxu0 0
    %252 = vmatpush.bf16.msra.mxu0 0
    %253 = vmatpush.bf16.msra.mxu0 %v180
    %254 = vmatpush.bf16.msra.mxu0 %v179
    %255 = vmatmul.bf16.gmra.mxu0 %v245
    %v256 = vpop.f32.mrf.mxu0
    %v257 = vadd.f32 0.0, %v256
    %v258 = vpop.f32.mrf.mxu0
    %259 = vdwg.mxu0
    %v261 = vrot.slane %v257, 6
    %v263 = vadd.f32 %v167, %v261
    %v264 = vxor.u32 %v263, 2147483648
    %v265 = vmul.f32 %v264, 1.442695
    %v266 = vpow.pop %v265
    %v267 = vadd.f32 %v266, 1.0
    %v268 = vrcp.pop %v267
    %v269 = vmul.f32 %v267, %v268
    %v270 = vsub.f32 1.0, %v269
    %v271 = vmul.f32 %v268, %v270
    %v272 = vadd.f32 %v268, %v271
    %vm273 = vweird.f32 %v267
    %vm274 = vweird.f32 %v268
    %vm275 = vmor %vm273, %vm274
    %v276 = vsel %vm275, %v268, %v272
    %v277 = vand.u32 2147483647, %v267
    %vm278 = vcmp.eq.f32.partialorder %v277, 8.507059e+37
    %v279 = vand.u32 %v267, 2147483648
    %v280 = vor.u32 1.1754944e-38, %v279
    %v281 = vsel %vm278, %v280, %v276
    %v282 = vmul.f32 1.0, %v281
    %v283 = vmul.f32 %v282, 2.0
    %v284 = vsub.f32 %v283, 1.0
    %v286 = vrot.slane %v231, 6
    %v288 = vmul.f32 %v282, %v286
    %290 = vrot.lane.b32.xlu0 %v284, 64
    %v291 = vpop.permute.xlu0 %290
    %v293 = vmul.f32 %v282, %v291
    %295 = vrot.lane.b32.xlu0 %v293, 32
    %v296 = vpop.permute.xlu0 %295
    %v298 = vadd.f32 %v288, %v296
    %v299 = vtanh.pop %v298
    %301 = vrot.lane.b32.xlu0 %v299, 64
    %v302 = vpop.permute.xlu0 %301
    %v304 = vmul.f32 %v282, %v302
    %v305 = vpack.c.bf16 %v304, %v304
    %v307 = vunpack.c.l.b16 %v305
    %v308 = vpack.c.b16 %v307, %v307
    %v309 = vrot.slane %v308, 1
    %310 = vrot.lane.b32.xlu0 %v309, 32
    %v311 = vpop.permute.xlu0 %310
    %v313 = vsel %vm153, %v311, 0
    %315 = vmatpush.bf16.msra.mxu0 0
    %316 = vmatpush.bf16.msra.mxu0 0
    %317 = vmatpush.bf16.msra.mxu0 0
    %318 = vmatpush.bf16.msra.mxu0 0
    %319 = vmatpush.bf16.msra.mxu0 0
    %320 = vmatpush.bf16.msra.mxu0 0
    %321 = vmatpush.bf16.msra.mxu0 %v180
    %322 = vmatpush.bf16.msra.mxu0 %v179
    %323 = vmatmul.bf16.gmra.mxu0 %v313
    %v324 = vpop.f32.mrf.mxu0
    %v325 = vadd.f32 0.0, %v324
    %v326 = vpop.f32.mrf.mxu0
    %327 = vdwg.mxu0
    %v329 = vrot.slane %v325, 4
    %v331 = vadd.f32 %v167, %v329
    %v332 = vxor.u32 %v331, 2147483648
    %v333 = vmul.f32 %v332, 1.442695
    %v334 = vpow.pop %v333
    %v335 = vadd.f32 %v334, 1.0
    %v336 = vrcp.pop %v335
    %v337 = vmul.f32 %v335, %v336
    %v338 = vsub.f32 1.0, %v337
    %v339 = vmul.f32 %v336, %v338
    %v340 = vadd.f32 %v336, %v339
    %vm341 = vweird.f32 %v335
    %vm342 = vweird.f32 %v336
    %vm343 = vmor %vm341, %vm342
    %v344 = vsel %vm343, %v336, %v340
    %v345 = vand.u32 2147483647, %v335
    %vm346 = vcmp.eq.f32.partialorder %v345, 8.507059e+37
    %v347 = vand.u32 %v335, 2147483648
    %v348 = vor.u32 1.1754944e-38, %v347
    %v349 = vsel %vm346, %v348, %v344
    %v350 = vmul.f32 1.0, %v349
    %v351 = vmul.f32 %v350, 2.0
    %v352 = vsub.f32 %v351, 1.0
    %v354 = vrot.slane %v298, 6
    %v356 = vmul.f32 %v350, %v354
    %358 = vrot.lane.b32.xlu0 %v352, 64
    %v359 = vpop.permute.xlu0 %358
    %v361 = vmul.f32 %v350, %v359
    %363 = vrot.lane.b32.xlu0 %v361, 32
    %v364 = vpop.permute.xlu0 %363
    %v366 = vadd.f32 %v356, %v364
    %v367 = vtanh.pop %v366
    %369 = vrot.lane.b32.xlu0 %v367, 64
    %v370 = vpop.permute.xlu0 %369
    %v372 = vmul.f32 %v350, %v370
    %v373 = vpack.c.bf16 %v372, %v372
    %v375 = vunpack.c.l.b16 %v373
    %v376 = vpack.c.b16 %v375, %v375
    %v377 = vrot.slane %v376, 2
    %378 = vrot.lane.b32.xlu0 %v377, 32
    %v379 = vpop.permute.xlu0 %378
    %v381 = vsel %vm153, %v379, 0
    %383 = vmatpush.bf16.msra.mxu0 0
    %384 = vmatpush.bf16.msra.mxu0 0
    %385 = vmatpush.bf16.msra.mxu0 0
    %386 = vmatpush.bf16.msra.mxu0 0
    %387 = vmatpush.bf16.msra.mxu0 0
    %388 = vmatpush.bf16.msra.mxu0 0
    %389 = vmatpush.bf16.msra.mxu0 %v180
    %390 = vmatpush.bf16.msra.mxu0 %v179
    %391 = vmatmul.bf16.gmra.mxu0 %v381
    %v392 = vpop.f32.mrf.mxu0
    %v393 = vadd.f32 0.0, %v392
    %v394 = vpop.f32.mrf.mxu0
    %395 = vdwg.mxu0
    %v397 = vrot.slane %v393, 2
    %v399 = vadd.f32 %v167, %v397
    %v400 = vxor.u32 %v399, 2147483648
    %v401 = vmul.f32 %v400, 1.442695
    %v402 = vpow.pop %v401
    %v403 = vadd.f32 %v402, 1.0
    %v404 = vrcp.pop %v403
    %v405 = vmul.f32 %v403, %v404
    %v406 = vsub.f32 1.0, %v405
    %v407 = vmul.f32 %v404, %v406
    %v408 = vadd.f32 %v404, %v407
    %vm409 = vweird.f32 %v403
    %vm410 = vweird.f32 %v404
    %vm411 = vmor %vm409, %vm410
    %v412 = vsel %vm411, %v404, %v408
    %v413 = vand.u32 2147483647, %v403
    %vm414 = vcmp.eq.f32.partialorder %v413, 8.507059e+37
    %v415 = vand.u32 %v403, 2147483648
    %v416 = vor.u32 1.1754944e-38, %v415
    %v417 = vsel %vm414, %v416, %v412
    %v418 = vmul.f32 1.0, %v417
    %v419 = vmul.f32 %v418, 2.0
    %v420 = vsub.f32 %v419, 1.0
    %v422 = vrot.slane %v366, 6
    %v424 = vmul.f32 %v418, %v422
    %426 = vrot.lane.b32.xlu0 %v420, 64
    %v427 = vpop.permute.xlu0 %426
    %v429 = vmul.f32 %v418, %v427
    %431 = vrot.lane.b32.xlu0 %v429, 32
    %v432 = vpop.permute.xlu0 %431
    %v434 = vadd.f32 %v424, %v432
    %v435 = vtanh.pop %v434
    %437 = vrot.lane.b32.xlu0 %v435, 64
    %v438 = vpop.permute.xlu0 %437
    %v440 = vmul.f32 %v418, %v438
    %v441 = vpack.c.bf16 %v440, %v440
    %v443 = vunpack.c.l.b16 %v441
    %v444 = vpack.c.b16 %v443, %v443
    %v445 = vrot.slane %v444, 3
    %446 = vrot.lane.b32.xlu0 %v445, 32
    %v447 = vpop.permute.xlu0 %446
    %v449 = vsel %vm153, %v447, 0
    %451 = vmatpush.bf16.msra.mxu0 0
    %452 = vmatpush.bf16.msra.mxu0 0
    %453 = vmatpush.bf16.msra.mxu0 0
    %454 = vmatpush.bf16.msra.mxu0 0
    %455 = vmatpush.bf16.msra.mxu0 0
    %456 = vmatpush.bf16.msra.mxu0 0
    %457 = vmatpush.bf16.msra.mxu0 %v180
    %458 = vmatpush.bf16.msra.mxu0 %v179
    %459 = vmatmul.bf16.gmra.mxu0 %v449
    %v460 = vpop.f32.mrf.mxu0
    %v461 = vadd.f32 0.0, %v460
    %v462 = vpop.f32.mrf.mxu0
    %463 = vdwg.mxu0
    %v464 = vadd.f32 %v169, %v461
    %v465 = vxor.u32 %v464, 2147483648
    %v466 = vmul.f32 %v465, 1.442695
    %v467 = vpow.pop %v466
    %v468 = vadd.f32 %v467, 1.0
    %v469 = vrcp.pop %v468
    %v470 = vmul.f32 %v468, %v469
    %v471 = vsub.f32 1.0, %v470
    %v472 = vmul.f32 %v469, %v471
    %v473 = vadd.f32 %v469, %v472
    %vm474 = vweird.f32 %v468
    %vm475 = vweird.f32 %v469
    %vm476 = vmor %vm474, %vm475
    %v477 = vsel %vm476, %v469, %v473
    %v478 = vand.u32 2147483647, %v468
    %vm479 = vcmp.eq.f32.partialorder %v478, 8.507059e+37
    %v480 = vand.u32 %v468, 2147483648
    %v481 = vor.u32 1.1754944e-38, %v480
    %v482 = vsel %vm479, %v481, %v477
    %v483 = vmul.f32 1.0, %v482
    %v484 = vmul.f32 %v483, 2.0
    %v485 = vsub.f32 %v484, 1.0
    %v487 = vrot.slane %v434, 6
    %v489 = vmul.f32 %v483, %v487
    %491 = vrot.lane.b32.xlu0 %v485, 64
    %v492 = vpop.permute.xlu0 %491
    %v494 = vmul.f32 %v483, %v492
    %496 = vrot.lane.b32.xlu0 %v494, 32
    %v497 = vpop.permute.xlu0 %496
    %v499 = vadd.f32 %v489, %v497
    %v500 = vtanh.pop %v499
    %502 = vrot.lane.b32.xlu0 %v500, 64
    %v503 = vpop.permute.xlu0 %502
    %v505 = vmul.f32 %v483, %v503
    %v506 = vpack.c.bf16 %v505, %v505
    %v508 = vunpack.c.l.b16 %v506
    %v509 = vpack.c.b16 %v508, %v508
    %510 = vrot.lane.b32.xlu0 %v509, 32
    %v511 = vpop.permute.xlu0 %510
    %v513 = vsel %vm153, %v511, 0
    %515 = vmatpush.bf16.msra.mxu0 0
    %516 = vmatpush.bf16.msra.mxu0 0
    %517 = vmatpush.bf16.msra.mxu0 0
    %518 = vmatpush.bf16.msra.mxu0 0
    %519 = vmatpush.bf16.msra.mxu0 0
    %520 = vmatpush.bf16.msra.mxu0 0
    %521 = vmatpush.bf16.msra.mxu0 %v180
    %522 = vmatpush.bf16.msra.mxu0 %v179
    %523 = vmatmul.bf16.gmra.mxu0 %v513
    %v524 = vpop.f32.mrf.mxu0
    %v525 = vadd.f32 0.0, %v524
    %v526 = vpop.f32.mrf.mxu0
    %527 = vdwg.mxu0
    %v529 = vrot.slane %v525, 6
    %v531 = vadd.f32 %v169, %v529
    %v532 = vxor.u32 %v531, 2147483648
    %v533 = vmul.f32 %v532, 1.442695
    %v534 = vpow.pop %v533
    %v535 = vadd.f32 %v534, 1.0
    %v536 = vrcp.pop %v535
    %v537 = vmul.f32 %v535, %v536
    %v538 = vsub.f32 1.0, %v537
    %v539 = vmul.f32 %v536, %v538
    %v540 = vadd.f32 %v536, %v539
    %vm541 = vweird.f32 %v535
    %vm542 = vweird.f32 %v536
    %vm543 = vmor %vm541, %vm542
    %v544 = vsel %vm543, %v536, %v540
    %v545 = vand.u32 2147483647, %v535
    %vm546 = vcmp.eq.f32.partialorder %v545, 8.507059e+37
    %v547 = vand.u32 %v535, 2147483648
    %v548 = vor.u32 1.1754944e-38, %v547
    %v549 = vsel %vm546, %v548, %v544
    %v550 = vmul.f32 1.0, %v549
    %v551 = vmul.f32 %v550, 2.0
    %v552 = vsub.f32 %v551, 1.0
    %v554 = vrot.slane %v499, 6
    %v556 = vmul.f32 %v550, %v554
    %558 = vrot.lane.b32.xlu0 %v552, 64
    %v559 = vpop.permute.xlu0 %558
    %v561 = vmul.f32 %v550, %v559
    %563 = vrot.lane.b32.xlu0 %v561, 32
    %v564 = vpop.permute.xlu0 %563
    %v566 = vadd.f32 %v556, %v564
    %v567 = vtanh.pop %v566
    %569 = vrot.lane.b32.xlu0 %v567, 64
    %v570 = vpop.permute.xlu0 %569
    %v572 = vmul.f32 %v550, %v570
    %v573 = vpack.c.bf16 %v572, %v572
    %v575 = vunpack.c.l.b16 %v573
    %v576 = vpack.c.b16 %v575, %v575
    %v577 = vrot.slane %v576, 1
    %578 = vrot.lane.b32.xlu0 %v577, 32
    %v579 = vpop.permute.xlu0 %578
    %v581 = vsel %vm153, %v579, 0
    %583 = vmatpush.bf16.msra.mxu0 0
    %584 = vmatpush.bf16.msra.mxu0 0
    %585 = vmatpush.bf16.msra.mxu0 0
    %586 = vmatpush.bf16.msra.mxu0 0
    %587 = vmatpush.bf16.msra.mxu0 0
    %588 = vmatpush.bf16.msra.mxu0 0
    %589 = vmatpush.bf16.msra.mxu0 %v180
    %590 = vmatpush.bf16.msra.mxu0 %v179
    %591 = vmatmul.bf16.gmra.mxu0 %v581
    %v592 = vpop.f32.mrf.mxu0
    %v593 = vadd.f32 0.0, %v592
    %v594 = vpop.f32.mrf.mxu0
    %595 = vdwg.mxu0
    %v597 = vrot.slane %v593, 4
    %v599 = vadd.f32 %v169, %v597
    %v600 = vxor.u32 %v599, 2147483648
    %v601 = vmul.f32 %v600, 1.442695
    %v602 = vpow.pop %v601
    %v603 = vadd.f32 %v602, 1.0
    %v604 = vrcp.pop %v603
    %v605 = vmul.f32 %v603, %v604
    %v606 = vsub.f32 1.0, %v605
    %v607 = vmul.f32 %v604, %v606
    %v608 = vadd.f32 %v604, %v607
    %vm609 = vweird.f32 %v603
    %vm610 = vweird.f32 %v604
    %vm611 = vmor %vm609, %vm610
    %v612 = vsel %vm611, %v604, %v608
    %v613 = vand.u32 2147483647, %v603
    %vm614 = vcmp.eq.f32.partialorder %v613, 8.507059e+37
    %v615 = vand.u32 %v603, 2147483648
    %v616 = vor.u32 1.1754944e-38, %v615
    %v617 = vsel %vm614, %v616, %v612
    %v618 = vmul.f32 1.0, %v617
    %v619 = vmul.f32 %v618, 2.0
    %v620 = vsub.f32 %v619, 1.0
    %v622 = vrot.slane %v566, 6
    %v624 = vmul.f32 %v618, %v622
    %626 = vrot.lane.b32.xlu0 %v620, 64
    %v627 = vpop.permute.xlu0 %626
    %v629 = vmul.f32 %v618, %v627
    %631 = vrot.lane.b32.xlu0 %v629, 32
    %v632 = vpop.permute.xlu0 %631
    %v634 = vadd.f32 %v624, %v632
    %v635 = vtanh.pop %v634
    %637 = vrot.lane.b32.xlu0 %v635, 64
    %v638 = vpop.permute.xlu0 %637
    %v640 = vmul.f32 %v618, %v638
    %v641 = vpack.c.bf16 %v640, %v640
    %v643 = vunpack.c.l.b16 %v641
    %v644 = vpack.c.b16 %v643, %v643
    %v645 = vrot.slane %v644, 2
    %646 = vrot.lane.b32.xlu0 %v645, 32
    %v647 = vpop.permute.xlu0 %646
    %v649 = vsel %vm153, %v647, 0
    %651 = vmatpush.bf16.msra.mxu0 0
    %652 = vmatpush.bf16.msra.mxu0 0
    %653 = vmatpush.bf16.msra.mxu0 0
    %654 = vmatpush.bf16.msra.mxu0 0
    %655 = vmatpush.bf16.msra.mxu0 0
    %656 = vmatpush.bf16.msra.mxu0 0
    %657 = vmatpush.bf16.msra.mxu0 %v180
    %658 = vmatpush.bf16.msra.mxu0 %v179
    %659 = vmatmul.bf16.gmra.mxu0 %v649
    %v660 = vpop.f32.mrf.mxu0
    %v661 = vadd.f32 0.0, %v660
    %v662 = vpop.f32.mrf.mxu0
    %663 = vdwg.mxu0
    %v665 = vrot.slane %v661, 2
    %v667 = vadd.f32 %v169, %v665
    %v668 = vxor.u32 %v667, 2147483648
    %v669 = vmul.f32 %v668, 1.442695
    %v670 = vpow.pop %v669
    %v671 = vadd.f32 %v670, 1.0
    %v672 = vrcp.pop %v671
    %v673 = vmul.f32 %v671, %v672
    %v674 = vsub.f32 1.0, %v673
    %v675 = vmul.f32 %v672, %v674
    %v676 = vadd.f32 %v672, %v675
    %vm677 = vweird.f32 %v671
    %vm678 = vweird.f32 %v672
    %vm679 = vmor %vm677, %vm678
    %v680 = vsel %vm679, %v672, %v676
    %v681 = vand.u32 2147483647, %v671
    %vm682 = vcmp.eq.f32.partialorder %v681, 8.507059e+37
    %v683 = vand.u32 %v671, 2147483648
    %v684 = vor.u32 1.1754944e-38, %v683
    %v685 = vsel %vm682, %v684, %v680
    %v686 = vmul.f32 1.0, %v685
    %v687 = vmul.f32 %v686, 2.0
    %v688 = vsub.f32 %v687, 1.0
    %v690 = vrot.slane %v634, 6
    %v692 = vmul.f32 %v686, %v690
    %694 = vrot.lane.b32.xlu0 %v688, 64
    %v695 = vpop.permute.xlu0 %694
    %v697 = vmul.f32 %v686, %v695
    %699 = vrot.lane.b32.xlu0 %v697, 32
    %v700 = vpop.permute.xlu0 %699
    %v702 = vadd.f32 %v692, %v700
    %v703 = vtanh.pop %v702
    %705 = vrot.lane.b32.xlu0 %v703, 64
    %v706 = vpop.permute.xlu0 %705
    %v708 = vmul.f32 %v686, %v706
    %v709 = vpack.c.bf16 %v708, %v708
    %v711 = vunpack.c.l.b16 %v709
    %v712 = vpack.c.b16 %v711, %v711
    %vm713 = vcmask 1040384
    %v716 = vsel %vm713, %v238, %v305
    %vm717 = vcmask 1041408
    %v719 = vsel %vm717, %v716, %v373
    %vm720 = vcmask 1042432
    %v722 = vsel %vm720, %v719, %v441
    %vm723 = vcmask 1043456
    %v725 = vsel %vm723, %v722, %v509
    %vm726 = vcmask 1044480
    %v728 = vsel %vm726, %v725, %v576
    %vm729 = vcmask 1045504
    %v731 = vsel %vm729, %v728, %v644
    %vm732 = vcmask 1046528
    %v734 = vsel %vm732, %v731, %v712
    %s735 = scalar_lea.vmem %s2, 16
    %v736 = vld [vmem:[%s735] sm:$0xf]
    %v737 = vld [vmem:[%s735 + $0x4] sm:$0xf]
    %v738 = vld [vmem:[%s735 + $0x8] sm:$0xf]
    %v739 = vld [vmem:[%s735 + $0xc] sm:$0xf]
    %s740 = scalar_lea.vmem %s3, 16
    %v741 = vld [vmem:[%s740] sm:$0xf]
    %v742 = vld [vmem:[%s740 + $0x4] sm:$0xf]
    %v743 = vld [vmem:[%s740 + $0x8] sm:$0xf]
    %v744 = vld [vmem:[%s740 + $0xc] sm:$0xf]
    %s745 = scalar_lea.vmem %s4, 1
    %v746 = vld [vmem:[%s745] sm:$0x1]
    %v748 = vperm.slane %v746, 0
    %751 = vrot.lane.b32.xlu0 %v734, 32
    %v752 = vpop.permute.xlu0 %751
    %v757 = vunpack.c.l.b16 %v736
    %v758 = vunpack.c.l.b16 %v737
    %v759 = vunpack.c.l.b16 %v738
    %v760 = vunpack.c.l.b16 %v739
    %v761 = vpack.c.b16 %v758, %v757
    %v762 = vpack.c.b16 %v760, %v759
    %v766 = vsel %vm153, %v752, 0
    %768 = vmatpush.bf16.msra.mxu0 0
    %769 = vmatpush.bf16.msra.mxu0 0
    %770 = vmatpush.bf16.msra.mxu0 0
    %771 = vmatpush.bf16.msra.mxu0 0
    %772 = vmatpush.bf16.msra.mxu0 0
    %773 = vmatpush.bf16.msra.mxu0 0
    %774 = vmatpush.bf16.msra.mxu0 %v762
    %775 = vmatpush.bf16.msra.mxu0 %v761
    %776 = vmatmul.bf16.gmra.mxu0 %v766
    %v777 = vpop.f32.mrf.mxu0
    %v778 = vadd.f32 %v748, %v777
    %v779 = vpop.f32.mrf.mxu0
    %v780 = vadd.f32 %v748, %v779
    %781 = vdwg.mxu0
    %v786 = vunpack.c.l.b16 %v741
    %v787 = vunpack.c.l.b16 %v742
    %v788 = vunpack.c.l.b16 %v743
    %v789 = vunpack.c.l.b16 %v744
    %v790 = vpack.c.b16 %v787, %v786
    %v791 = vpack.c.b16 %v789, %v788
    %794 = vmatpush.bf16.msra.mxu0 0
    %795 = vmatpush.bf16.msra.mxu0 0
    %796 = vmatpush.bf16.msra.mxu0 0
    %797 = vmatpush.bf16.msra.mxu0 0
    %798 = vmatpush.bf16.msra.mxu0 0
    %799 = vmatpush.bf16.msra.mxu0 0
    %800 = vmatpush.bf16.msra.mxu0 %v791
    %801 = vmatpush.bf16.msra.mxu0 %v790
    %802 = vmatmul.bf16.gmra.mxu0 %v184
    %v803 = vpop.f32.mrf.mxu0
    %v804 = vadd.f32 0.0, %v803
    %v805 = vpop.f32.mrf.mxu0
    %806 = vdwg.mxu0
    %v807 = vadd.f32 %v778, %v804
    %v808 = vxor.u32 %v807, 2147483648
    %v809 = vmul.f32 %v808, 1.442695
    %v810 = vpow.pop %v809
    %v811 = vadd.f32 %v810, 1.0
    %v812 = vrcp.pop %v811
    %v813 = vmul.f32 %v811, %v812
    %v814 = vsub.f32 1.0, %v813
    %v815 = vmul.f32 %v812, %v814
    %v816 = vadd.f32 %v812, %v815
    %vm817 = vweird.f32 %v811
    %vm818 = vweird.f32 %v812
    %vm819 = vmor %vm817, %vm818
    %v820 = vsel %vm819, %v812, %v816
    %v821 = vand.u32 2147483647, %v811
    %vm822 = vcmp.eq.f32.partialorder %v821, 8.507059e+37
    %v823 = vand.u32 %v811, 2147483648
    %v824 = vor.u32 1.1754944e-38, %v823
    %v825 = vsel %vm822, %v824, %v820
    %v826 = vmul.f32 1.0, %v825
    %v827 = vmul.f32 %v826, 2.0
    %v828 = vsub.f32 %v827, 1.0
    %v829 = vmul.f32 %v826, 0.0
    %831 = vrot.lane.b32.xlu0 %v828, 64
    %v832 = vpop.permute.xlu0 %831
    %v834 = vmul.f32 %v826, %v832
    %836 = vrot.lane.b32.xlu0 %v834, 32
    %v837 = vpop.permute.xlu0 %836
    %v839 = vadd.f32 %v829, %v837
    %v840 = vtanh.pop %v839
    %842 = vrot.lane.b32.xlu0 %v840, 64
    %v843 = vpop.permute.xlu0 %842
    %v845 = vmul.f32 %v826, %v843
    %v846 = vpack.c.bf16 %v845, %v845
    %848 = vrot.lane.b32.xlu0 %v846, 32
    %v849 = vpop.permute.xlu0 %848
    %v851 = vsel %vm153, %v849, 0
    %853 = vmatpush.bf16.msra.mxu0 0
    %854 = vmatpush.bf16.msra.mxu0 0
    %855 = vmatpush.bf16.msra.mxu0 0
    %856 = vmatpush.bf16.msra.mxu0 0
    %857 = vmatpush.bf16.msra.mxu0 0
    %858 = vmatpush.bf16.msra.mxu0 0
    %859 = vmatpush.bf16.msra.mxu0 %v791
    %860 = vmatpush.bf16.msra.mxu0 %v790
    %861 = vmatmul.bf16.gmra.mxu0 %v851
    %v862 = vpop.f32.mrf.mxu0
    %v863 = vadd.f32 0.0, %v862
    %v864 = vpop.f32.mrf.mxu0
    %865 = vdwg.mxu0
    %v867 = vrot.slane %v863, 6
    %v869 = vadd.f32 %v778, %v867
    %v870 = vxor.u32 %v869, 2147483648
    %v871 = vmul.f32 %v870, 1.442695
    %v872 = vpow.pop %v871
    %v873 = vadd.f32 %v872, 1.0
    %v874 = vrcp.pop %v873
    %v875 = vmul.f32 %v873, %v874
    %v876 = vsub.f32 1.0, %v875
    %v877 = vmul.f32 %v874, %v876
    %v878 = vadd.f32 %v874, %v877
    %vm879 = vweird.f32 %v873
    %vm880 = vweird.f32 %v874
    %vm881 = vmor %vm879, %vm880
    %v882 = vsel %vm881, %v874, %v878
    %v883 = vand.u32 2147483647, %v873
    %vm884 = vcmp.eq.f32.partialorder %v883, 8.507059e+37
    %v885 = vand.u32 %v873, 2147483648
    %v886 = vor.u32 1.1754944e-38, %v885
    %v887 = vsel %vm884, %v886, %v882
    %v888 = vmul.f32 1.0, %v887
    %v889 = vmul.f32 %v888, 2.0
    %v890 = vsub.f32 %v889, 1.0
    %v892 = vrot.slane %v839, 6
    %v894 = vmul.f32 %v888, %v892
    %896 = vrot.lane.b32.xlu0 %v890, 64
    %v897 = vpop.permute.xlu0 %896
    %v899 = vmul.f32 %v888, %v897
    %901 = vrot.lane.b32.xlu0 %v899, 32
    %v902 = vpop.permute.xlu0 %901
    %v904 = vadd.f32 %v894, %v902
    %v905 = vtanh.pop %v904
    %907 = vrot.lane.b32.xlu0 %v905, 64
    %v908 = vpop.permute.xlu0 %907
    %v910 = vmul.f32 %v888, %v908
    %v911 = vpack.c.bf16 %v910, %v910
    %v913 = vrot.slane %v911, 1
    %914 = vrot.lane.b32.xlu0 %v913, 32
    %v915 = vpop.permute.xlu0 %914
    %v917 = vsel %vm153, %v915, 0
    %919 = vmatpush.bf16.msra.mxu0 0
    %920 = vmatpush.bf16.msra.mxu0 0
    %921 = vmatpush.bf16.msra.mxu0 0
    %922 = vmatpush.bf16.msra.mxu0 0
    %923 = vmatpush.bf16.msra.mxu0 0
    %924 = vmatpush.bf16.msra.mxu0 0
    %925 = vmatpush.bf16.msra.mxu0 %v791
    %926 = vmatpush.bf16.msra.mxu0 %v790
    %927 = vmatmul.bf16.gmra.mxu0 %v917
    %v928 = vpop.f32.mrf.mxu0
    %v929 = vadd.f32 0.0, %v928
    %v930 = vpop.f32.mrf.mxu0
    %931 = vdwg.mxu0
    %v933 = vrot.slane %v929, 4
    %v935 = vadd.f32 %v778, %v933
    %v936 = vxor.u32 %v935, 2147483648
    %v937 = vmul.f32 %v936, 1.442695
    %v938 = vpow.pop %v937
    %v939 = vadd.f32 %v938, 1.0
    %v940 = vrcp.pop %v939
    %v941 = vmul.f32 %v939, %v940
    %v942 = vsub.f32 1.0, %v941
    %v943 = vmul.f32 %v940, %v942
    %v944 = vadd.f32 %v940, %v943
    %vm945 = vweird.f32 %v939
    %vm946 = vweird.f32 %v940
    %vm947 = vmor %vm945, %vm946
    %v948 = vsel %vm947, %v940, %v944
    %v949 = vand.u32 2147483647, %v939
    %vm950 = vcmp.eq.f32.partialorder %v949, 8.507059e+37
    %v951 = vand.u32 %v939, 2147483648
    %v952 = vor.u32 1.1754944e-38, %v951
    %v953 = vsel %vm950, %v952, %v948
    %v954 = vmul.f32 1.0, %v953
    %v955 = vmul.f32 %v954, 2.0
    %v956 = vsub.f32 %v955, 1.0
    %v958 = vrot.slane %v904, 6
    %v960 = vmul.f32 %v954, %v958
    %962 = vrot.lane.b32.xlu0 %v956, 64
    %v963 = vpop.permute.xlu0 %962
    %v965 = vmul.f32 %v954, %v963
    %967 = vrot.lane.b32.xlu0 %v965, 32
    %v968 = vpop.permute.xlu0 %967
    %v970 = vadd.f32 %v960, %v968
    %v971 = vtanh.pop %v970
    %973 = vrot.lane.b32.xlu0 %v971, 64
    %v974 = vpop.permute.xlu0 %973
    %v976 = vmul.f32 %v954, %v974
    %v977 = vpack.c.bf16 %v976, %v976
    %v979 = vrot.slane %v977, 2
    %980 = vrot.lane.b32.xlu0 %v979, 32
    %v981 = vpop.permute.xlu0 %980
    %v983 = vsel %vm153, %v981, 0
    %985 = vmatpush.bf16.msra.mxu0 0
    %986 = vmatpush.bf16.msra.mxu0 0
    %987 = vmatpush.bf16.msra.mxu0 0
    %988 = vmatpush.bf16.msra.mxu0 0
    %989 = vmatpush.bf16.msra.mxu0 0
    %990 = vmatpush.bf16.msra.mxu0 0
    %991 = vmatpush.bf16.msra.mxu0 %v791
    %992 = vmatpush.bf16.msra.mxu0 %v790
    %993 = vmatmul.bf16.gmra.mxu0 %v983
    %v994 = vpop.f32.mrf.mxu0
    %v995 = vadd.f32 0.0, %v994
    %v996 = vpop.f32.mrf.mxu0
    %997 = vdwg.mxu0
    %v999 = vrot.slane %v995, 2
    %v1001 = vadd.f32 %v778, %v999
    %v1002 = vxor.u32 %v1001, 2147483648
    %v1003 = vmul.f32 %v1002, 1.442695
    %v1004 = vpow.pop %v1003
    %v1005 = vadd.f32 %v1004, 1.0
    %v1006 = vrcp.pop %v1005
    %v1007 = vmul.f32 %v1005, %v1006
    %v1008 = vsub.f32 1.0, %v1007
    %v1009 = vmul.f32 %v1006, %v1008
    %v1010 = vadd.f32 %v1006, %v1009
    %vm1011 = vweird.f32 %v1005
    %vm1012 = vweird.f32 %v1006
    %vm1013 = vmor %vm1011, %vm1012
    %v1014 = vsel %vm1013, %v1006, %v1010
    %v1015 = vand.u32 2147483647, %v1005
    %vm1016 = vcmp.eq.f32.partialorder %v1015, 8.507059e+37
    %v1017 = vand.u32 %v1005, 2147483648
    %v1018 = vor.u32 1.1754944e-38, %v1017
    %v1019 = vsel %vm1016, %v1018, %v1014
    %v1020 = vmul.f32 1.0, %v1019
    %v1021 = vmul.f32 %v1020, 2.0
    %v1022 = vsub.f32 %v1021, 1.0
    %v1024 = vrot.slane %v970, 6
    %v1026 = vmul.f32 %v1020, %v1024
    %1028 = vrot.lane.b32.xlu0 %v1022, 64
    %v1029 = vpop.permute.xlu0 %1028
    %v1031 = vmul.f32 %v1020, %v1029
    %1033 = vrot.lane.b32.xlu0 %v1031, 32
    %v1034 = vpop.permute.xlu0 %1033
    %v1036 = vadd.f32 %v1026, %v1034
    %v1037 = vtanh.pop %v1036
    %1039 = vrot.lane.b32.xlu0 %v1037, 64
    %v1040 = vpop.permute.xlu0 %1039
    %v1042 = vmul.f32 %v1020, %v1040
    %v1043 = vpack.c.bf16 %v1042, %v1042
    %v1045 = vrot.slane %v1043, 3
    %1046 = vrot.lane.b32.xlu0 %v1045, 32
    %v1047 = vpop.permute.xlu0 %1046
    %v1049 = vsel %vm153, %v1047, 0
    %1051 = vmatpush.bf16.msra.mxu0 0
    %1052 = vmatpush.bf16.msra.mxu0 0
    %1053 = vmatpush.bf16.msra.mxu0 0
    %1054 = vmatpush.bf16.msra.mxu0 0
    %1055 = vmatpush.bf16.msra.mxu0 0
    %1056 = vmatpush.bf16.msra.mxu0 0
    %1057 = vmatpush.bf16.msra.mxu0 %v791
    %1058 = vmatpush.bf16.msra.mxu0 %v790
    %1059 = vmatmul.bf16.gmra.mxu0 %v1049
    %v1060 = vpop.f32.mrf.mxu0
    %v1061 = vadd.f32 0.0, %v1060
    %v1062 = vpop.f32.mrf.mxu0
    %1063 = vdwg.mxu0
    %v1064 = vadd.f32 %v780, %v1061
    %v1065 = vxor.u32 %v1064, 2147483648
    %v1066 = vmul.f32 %v1065, 1.442695
    %v1067 = vpow.pop %v1066
    %v1068 = vadd.f32 %v1067, 1.0
    %v1069 = vrcp.pop %v1068
    %v1070 = vmul.f32 %v1068, %v1069
    %v1071 = vsub.f32 1.0, %v1070
    %v1072 = vmul.f32 %v1069, %v1071
    %v1073 = vadd.f32 %v1069, %v1072
    %vm1074 = vweird.f32 %v1068
    %vm1075 = vweird.f32 %v1069
    %vm1076 = vmor %vm1074, %vm1075
    %v1077 = vsel %vm1076, %v1069, %v1073
    %v1078 = vand.u32 2147483647, %v1068
    %vm1079 = vcmp.eq.f32.partialorder %v1078, 8.507059e+37
    %v1080 = vand.u32 %v1068, 2147483648
    %v1081 = vor.u32 1.1754944e-38, %v1080
    %v1082 = vsel %vm1079, %v1081, %v1077
    %v1083 = vmul.f32 1.0, %v1082
    %v1084 = vmul.f32 %v1083, 2.0
    %v1085 = vsub.f32 %v1084, 1.0
    %v1087 = vrot.slane %v1036, 6
    %v1089 = vmul.f32 %v1083, %v1087
    %1091 = vrot.lane.b32.xlu0 %v1085, 64
    %v1092 = vpop.permute.xlu0 %1091
    %v1094 = vmul.f32 %v1083, %v1092
    %1096 = vrot.lane.b32.xlu0 %v1094, 32
    %v1097 = vpop.permute.xlu0 %1096
    %v1099 = vadd.f32 %v1089, %v1097
    %v1100 = vtanh.pop %v1099
    %1102 = vrot.lane.b32.xlu0 %v1100, 64
    %v1103 = vpop.permute.xlu0 %1102
    %v1105 = vmul.f32 %v1083, %v1103
    %v1106 = vpack.c.bf16 %v1105, %v1105
    %1108 = vrot.lane.b32.xlu0 %v1106, 32
    %v1109 = vpop.permute.xlu0 %1108
    %v1111 = vsel %vm153, %v1109, 0
    %1113 = vmatpush.bf16.msra.mxu0 0
    %1114 = vmatpush.bf16.msra.mxu0 0
    %1115 = vmatpush.bf16.msra.mxu0 0
    %1116 = vmatpush.bf16.msra.mxu0 0
    %1117 = vmatpush.bf16.msra.mxu0 0
    %1118 = vmatpush.bf16.msra.mxu0 0
    %1119 = vmatpush.bf16.msra.mxu0 %v791
    %1120 = vmatpush.bf16.msra.mxu0 %v790
    %1121 = vmatmul.bf16.gmra.mxu0 %v1111
    %v1122 = vpop.f32.mrf.mxu0
    %v1123 = vadd.f32 0.0, %v1122
    %v1124 = vpop.f32.mrf.mxu0
    %1125 = vdwg.mxu0
    %v1127 = vrot.slane %v1123, 6
    %v1129 = vadd.f32 %v780, %v1127
    %v1130 = vxor.u32 %v1129, 2147483648
    %v1131 = vmul.f32 %v1130, 1.442695
    %v1132 = vpow.pop %v1131
    %v1133 = vadd.f32 %v1132, 1.0
    %v1134 = vrcp.pop %v1133
    %v1135 = vmul.f32 %v1133, %v1134
    %v1136 = vsub.f32 1.0, %v1135
    %v1137 = vmul.f32 %v1134, %v1136
    %v1138 = vadd.f32 %v1134, %v1137
    %vm1139 = vweird.f32 %v1133
    %vm1140 = vweird.f32 %v1134
    %vm1141 = vmor %vm1139, %vm1140
    %v1142 = vsel %vm1141, %v1134, %v1138
    %v1143 = vand.u32 2147483647, %v1133
    %vm1144 = vcmp.eq.f32.partialorder %v1143, 8.507059e+37
    %v1145 = vand.u32 %v1133, 2147483648
    %v1146 = vor.u32 1.1754944e-38, %v1145
    %v1147 = vsel %vm1144, %v1146, %v1142
    %v1148 = vmul.f32 1.0, %v1147
    %v1149 = vmul.f32 %v1148, 2.0
    %v1150 = vsub.f32 %v1149, 1.0
    %v1152 = vrot.slane %v1099, 6
    %v1154 = vmul.f32 %v1148, %v1152
    %1156 = vrot.lane.b32.xlu0 %v1150, 64
    %v1157 = vpop.permute.xlu0 %1156
    %v1159 = vmul.f32 %v1148, %v1157
    %1161 = vrot.lane.b32.xlu0 %v1159, 32
    %v1162 = vpop.permute.xlu0 %1161
    %v1164 = vadd.f32 %v1154, %v1162
    %v1165 = vtanh.pop %v1164
    %1167 = vrot.lane.b32.xlu0 %v1165, 64
    %v1168 = vpop.permute.xlu0 %1167
    %v1170 = vmul.f32 %v1148, %v1168
    %v1171 = vpack.c.bf16 %v1170, %v1170
    %v1173 = vrot.slane %v1171, 1
    %1174 = vrot.lane.b32.xlu0 %v1173, 32
    %v1175 = vpop.permute.xlu0 %1174
    %v1177 = vsel %vm153, %v1175, 0
    %1179 = vmatpush.bf16.msra.mxu0 0
    %1180 = vmatpush.bf16.msra.mxu0 0
    %1181 = vmatpush.bf16.msra.mxu0 0
    %1182 = vmatpush.bf16.msra.mxu0 0
    %1183 = vmatpush.bf16.msra.mxu0 0
    %1184 = vmatpush.bf16.msra.mxu0 0
    %1185 = vmatpush.bf16.msra.mxu0 %v791
    %1186 = vmatpush.bf16.msra.mxu0 %v790
    %1187 = vmatmul.bf16.gmra.mxu0 %v1177
    %v1188 = vpop.f32.mrf.mxu0
    %v1189 = vadd.f32 0.0, %v1188
    %v1190 = vpop.f32.mrf.mxu0
    %1191 = vdwg.mxu0
    %v1193 = vrot.slane %v1189, 4
    %v1195 = vadd.f32 %v780, %v1193
    %v1196 = vxor.u32 %v1195, 2147483648
    %v1197 = vmul.f32 %v1196, 1.442695
    %v1198 = vpow.pop %v1197
    %v1199 = vadd.f32 %v1198, 1.0
    %v1200 = vrcp.pop %v1199
    %v1201 = vmul.f32 %v1199, %v1200
    %v1202 = vsub.f32 1.0, %v1201
    %v1203 = vmul.f32 %v1200, %v1202
    %v1204 = vadd.f32 %v1200, %v1203
    %vm1205 = vweird.f32 %v1199
    %vm1206 = vweird.f32 %v1200
    %vm1207 = vmor %vm1205, %vm1206
    %v1208 = vsel %vm1207, %v1200, %v1204
    %v1209 = vand.u32 2147483647, %v1199
    %vm1210 = vcmp.eq.f32.partialorder %v1209, 8.507059e+37
    %v1211 = vand.u32 %v1199, 2147483648
    %v1212 = vor.u32 1.1754944e-38, %v1211
    %v1213 = vsel %vm1210, %v1212, %v1208
    %v1214 = vmul.f32 1.0, %v1213
    %v1215 = vmul.f32 %v1214, 2.0
    %v1216 = vsub.f32 %v1215, 1.0
    %v1218 = vrot.slane %v1164, 6
    %v1220 = vmul.f32 %v1214, %v1218
    %1222 = vrot.lane.b32.xlu0 %v1216, 64
    %v1223 = vpop.permute.xlu0 %1222
    %v1225 = vmul.f32 %v1214, %v1223
    %1227 = vrot.lane.b32.xlu0 %v1225, 32
    %v1228 = vpop.permute.xlu0 %1227
    %v1230 = vadd.f32 %v1220, %v1228
    %v1231 = vtanh.pop %v1230
    %1233 = vrot.lane.b32.xlu0 %v1231, 64
    %v1234 = vpop.permute.xlu0 %1233
    %v1236 = vmul.f32 %v1214, %v1234
    %v1237 = vpack.c.bf16 %v1236, %v1236
    %v1239 = vrot.slane %v1237, 2
    %1240 = vrot.lane.b32.xlu0 %v1239, 32
    %v1241 = vpop.permute.xlu0 %1240
    %v1243 = vsel %vm153, %v1241, 0
    %1245 = vmatpush.bf16.msra.mxu0 0
    %1246 = vmatpush.bf16.msra.mxu0 0
    %1247 = vmatpush.bf16.msra.mxu0 0
    %1248 = vmatpush.bf16.msra.mxu0 0
    %1249 = vmatpush.bf16.msra.mxu0 0
    %1250 = vmatpush.bf16.msra.mxu0 0
    %1251 = vmatpush.bf16.msra.mxu0 %v791
    %1252 = vmatpush.bf16.msra.mxu0 %v790
    %1253 = vmatmul.bf16.gmra.mxu0 %v1243
    %v1254 = vpop.f32.mrf.mxu0
    %v1255 = vadd.f32 0.0, %v1254
    %v1256 = vpop.f32.mrf.mxu0
    %1257 = vdwg.mxu0
    %v1259 = vrot.slane %v1255, 2
    %v1261 = vadd.f32 %v780, %v1259
    %v1262 = vxor.u32 %v1261, 2147483648
    %v1263 = vmul.f32 %v1262, 1.442695
    %v1264 = vpow.pop %v1263
    %v1265 = vadd.f32 %v1264, 1.0
    %v1266 = vrcp.pop %v1265
    %v1267 = vmul.f32 %v1265, %v1266
    %v1268 = vsub.f32 1.0, %v1267
    %v1269 = vmul.f32 %v1266, %v1268
    %v1270 = vadd.f32 %v1266, %v1269
    %vm1271 = vweird.f32 %v1265
    %vm1272 = vweird.f32 %v1266
    %vm1273 = vmor %vm1271, %vm1272
    %v1274 = vsel %vm1273, %v1266, %v1270
    %v1275 = vand.u32 2147483647, %v1265
    %vm1276 = vcmp.eq.f32.partialorder %v1275, 8.507059e+37
    %v1277 = vand.u32 %v1265, 2147483648
    %v1278 = vor.u32 1.1754944e-38, %v1277
    %v1279 = vsel %vm1276, %v1278, %v1274
    %v1280 = vmul.f32 1.0, %v1279
    %v1281 = vmul.f32 %v1280, 2.0
    %v1282 = vsub.f32 %v1281, 1.0
    %v1284 = vrot.slane %v1230, 6
    %v1286 = vmul.f32 %v1280, %v1284
    %1288 = vrot.lane.b32.xlu0 %v1282, 64
    %v1289 = vpop.permute.xlu0 %1288
    %v1291 = vmul.f32 %v1280, %v1289
    %1293 = vrot.lane.b32.xlu0 %v1291, 32
    %v1294 = vpop.permute.xlu0 %1293
    %v1296 = vadd.f32 %v1286, %v1294
    %v1297 = vtanh.pop %v1296
    %1299 = vrot.lane.b32.xlu0 %v1297, 64
    %v1300 = vpop.permute.xlu0 %1299
    %v1302 = vmul.f32 %v1280, %v1300
    %v1304 = vrot.slane %v708, 6
    %v1307 = vrot.slane %v1302, 4
    %v1309 = vsel %vm717, %v1304, %v1307
    %v1311 = vperm.slane %v128, 0
    %1314 = vrot.lane.b32.xlu0 %v1309, 32
    %v1315 = vpop.permute.xlu0 %1314
    %v1316 = vsel %vm153, %v1315, 0
    %1318 = vmatpush.msra.mxu0 0.0
    %1319 = vmatpush.msra.mxu0 0.0
    %1320 = vmatpush.msra.mxu0 0.0
    %1321 = vmatpush.msra.mxu0 0.0
    %1322 = vmatpush.msra.mxu0 0.0
    %1323 = vmatpush.msra.mxu0 0.0
    %1324 = vmatpush.msra.mxu0 0.0
    %1325 = vmatpush.msra.mxu0 0.0
    %1326 = vmatpush.msra.mxu0 0.0
    %1327 = vmatpush.msra.mxu0 0.0
    %1328 = vmatpush.msra.mxu0 0.0
    %1329 = vmatpush.msra.mxu0 0.0
    %1330 = vmatpush.msra.mxu0 %v127
    %1331 = vmatpush.msra.mxu0 %v126
    %1332 = vmatpush.msra.mxu0 %v125
    %1333 = vmatpush.msra.mxu0 %v124
    %1334 = vmatmul.f32.gmra.mxu0 %v1316
    %v1335 = vpop.f32.mrf.mxu0
    %v1336 = vadd.f32 %v1311, %v1335
    %1337 = vdwg.mxu0
    %vm1338 = vcmask 58368
    %v1339 = vsel %vm1338, %v1336, -inf
    %v1340 = vrot.slane %v1339, 4
    %v1341 = vmax.f32 %v1339, %v1340
    %v1342 = vrot.slane %v1341, 2
    %v1343 = vmax.f32 %v1341, %v1342
    %v1344 = vrot.slane %v1343, 1
    %v1345 = vmax.f32 %v1343, %v1344
    %v1346 = vsub.f32 %v1336, %v1345
    %v1347 = vmul.f32 %v1346, 1.442695
    %v1348 = vpow.pop %v1347
    %v1349 = vsel %vm1338, %v1348, 0.0
    %v1350 = vrot.slane %v1349, 4
    %v1351 = vadd.f32 %v1349, %v1350
    %v1352 = vrot.slane %v1351, 2
    %v1353 = vadd.f32 %v1351, %v1352
    %v1354 = vrot.slane %v1353, 1
    %v1355 = vadd.f32 %v1353, %v1354
    %v1356 = vlog2.pop %v1355
    %v1357 = vmul.f32 %v1356, 0.6931472
    %v1358 = vadd.f32 %v1345, %v1357
    %v1359 = vsub.f32 %v1336, %v1358
    %1360 = vst.msk [vmem:[#allocation2] sm:$0x3] %vm1338, %v1359
    %vm1361 = vcmask 60418
    %v1362 = vsel %vm1361, %v1336, -inf
    %v1363 = vrot.slane %v1362, 4
    %v1364 = vmax.f32 %v1362, %v1363
    %v1365 = vrot.slane %v1364, 2
    %v1366 = vmax.f32 %v1364, %v1365
    %v1367 = vrot.slane %v1366, 1
    %v1368 = vmax.f32 %v1366, %v1367
    %v1369 = vsub.f32 %v1336, %v1368
    %v1370 = vmul.f32 %v1369, 1.442695
    %v1371 = vpow.pop %v1370
    %v1373 = vrot.slane %v1371, 2
    %v1375 = vsel %vm1338, %v1373, 0.0
    %v1376 = vrot.slane %v1375, 4
    %v1377 = vadd.f32 %v1375, %v1376
    %v1378 = vrot.slane %v1377, 2
    %v1379 = vadd.f32 %v1377, %v1378
    %v1380 = vrot.slane %v1379, 1
    %v1381 = vadd.f32 %v1379, %v1380
    %v1382 = vlog2.pop %v1381
    %v1383 = vmul.f32 %v1382, 0.6931472
    %v1384 = vadd.f32 %v1368, %v1383
    %v1385 = vsub.f32 %v1336, %v1384
    %s1386 = scalar_lea.vmem [#allocation2], 2
    %1387 = vst.msk [vmem:[%s1386 - $0x2] sm:$0xc] %vm1361, %v1385
    // Predicated region
    $region30: #{lstm_classifier_forward.1} parent=1 // pred_check
      _
    $region31: #{lstm_classifier_forward.1} parent=1 // pred_check_branch
      %1389 = sbr.rel (0) target = $region33
    $region32: #{lstm_classifier_forward.1} parent=1 // pred_region
      %1391 = vsyncadd [#allocation3], 0
      %s1392 = sshll.u32 [#allocation2], 4
      %s1393 = int_to_ptr.vmem [resolvable:$true] %s1392
      %s1394 = sshll.u32 %s7, 4
      %s1395 = int_to_ptr.hbm [resolvable:$true] %s1394
      %1400 = dma.vmem_to_hbm [thread:$0]  %s1393, 64, %s1395, [#allocation3], 32, 32, 2
    $region33: #{lstm_classifier_forward.1} parent=1 // pred_fallthru
      _
    // Predicated region
    $region34: #{lstm_classifier_forward.1} parent=1 // pred_check
      _
    $region35: #{lstm_classifier_forward.1} parent=1 // pred_check_branch
      %1402 = sbr.rel (0) target = $region37
    $region36: #{lstm_classifier_forward.1} parent=1 // pred_region
      %1404 = dma.done [#allocation3], 64
    $region37: #{lstm_classifier_forward.1} parent=1 // pred_fallthru
      _
    %1405 = vsyncpa [#allocation3], 1

</llo_original>
